<compile_context>
chip_gen: v6e
topology: v6e:2x2x1
jax: 0.10.0
libtpu: 0.0.40
codegen_flags: <defaults>
</compile_context>

<pallas_src>
import jax
import jax.numpy as jnp
from jax.experimental import pallas as pl
from jax.experimental.pallas import tpu as pltpu


def _policy_actor_kernel(x_ref, p_ref, w2_ref, o_ref):
    # x_ref : (4, TILE_B) f32        (streamed per grid step)
    # p_ref : (400, 8)   f32 packed  (grid-resident)
    #         cols 0:4 = w1, col 4 = b1, col 5[:300] = b2,
    #         col 6[:300] = w3, [0, 7] = b3
    # w2_ref: (300, 400) bf16/f32    (grid-resident, pre-cast on host)
    # o_ref : (1, TILE_B) f32        (lane-dense output block)
    x = x_ref[...]
    p = p_ref[...]
    w1 = p[:, 0:4]          # (400, 4)
    b1 = p[:, 4:5]          # (400, 1)
    b2 = p[:300, 5:6]       # (300, 1)
    w3 = p[:300, 6:7]       # (300, 1)
    b3 = p[0:1, 7:8]        # (1, 1)

    # fc1 (K=4): four broadcast multiply-adds on the VPU (skip the MXU).
    h1 = b1
    for k in range(4):
        h1 = h1 + w1[:, k:k + 1] * x[k:k + 1, :]      # outer-product FMA
    h1 = jnp.maximum(h1, 0.0)                         # (400, TILE_B) f32

    # fc2: the only real matmul -> MXU, f32 accumulation.
    # w2 already arrives in the matmul dtype; only h1 is cast here.
    w2 = w2_ref[...]
    h2 = jnp.dot(w2, h1.astype(w2.dtype), preferred_element_type=jnp.float32)
    h2 = jnp.maximum(h2 + b2, 0.0)                    # (300, TILE_B) f32

    # fc3 (N=1): VPU multiply + cross-sublane reduce (no MXU push/pop).
    # NOTE: the only reductions are along the feature (sublane) axis, never
    # along the batch (lane) axis -> ragged-tail lanes stay isolated.
    h3 = jnp.sum(w3 * h2, axis=0, keepdims=True) + b3
    o_ref[...] = jnp.tanh(h3)                         # (1, TILE_B)


def _auto_tile_b(B, max_tile=2048):
    """Lane-aligned batch tile: big (amortize per-step overhead), but split
    two ways when possible so a v7x chip uses both TensorCores."""
    if B <= 256:
        return 256
    half = -(-B // 2)                 # cdiv(B, 2)
    t = -(-half // 256) * 256         # round up to 256 (MXU N alignment)
    return min(t, max_tile)


def policy_actor_forward(x, params, *, tile_b=None, matmul_dtype=jnp.bfloat16):
    """x: (B, 4).  params in PyTorch nn.Linear layout.  Returns (B, 1) f32."""
    w1, b1, w2, b2, w3, b3 = params
    B = x.shape[0]
    if tile_b is None:
        tile_b = _auto_tile_b(B)
    num_tiles = pl.cdiv(B, tile_b)

    # Batch on the lane axis.  No zero-pad: Pallas handles the ragged last
    # block; the padded tail is sliced off below.
    x_t = x.astype(jnp.float32).T                          # (4, B)

    # Pack all small resident params into one f32 slab.
    p = jnp.zeros((400, 8), jnp.float32)
    p = p.at[:, 0:4].set(w1.astype(jnp.float32))
    p = p.at[:, 4].set(b1.reshape(400).astype(jnp.float32))
    p = p.at[:300, 5].set(b2.reshape(300).astype(jnp.float32))
    p = p.at[:300, 6].set(w3.reshape(300).astype(jnp.float32))
    p = p.at[0, 7].set(b3.reshape(()).astype(jnp.float32))

    # Hoist the w2 cast to the host: cast once, DMA half the bytes.
    w2_mm = w2.astype(matmul_dtype)

    cost = pl.CostEstimate(
        flops=2 * B * (4 * 400 + 400 * 300 + 300),
        transcendentals=B,                                  # one tanh / elem
        bytes_accessed=int(p.size) * 4
        + int(w2_mm.size) * int(w2_mm.dtype.itemsize)
        + B * 4 * 4 + B * 4,
    )

    out = pl.pallas_call(
        _policy_actor_kernel,
        out_shape=jax.ShapeDtypeStruct((1, B), jnp.float32),
        grid=(num_tiles,),
        in_specs=[
            pl.BlockSpec((4, tile_b), lambda i: (0, i)),    # x (streamed)
            pl.BlockSpec((400, 8), lambda i: (0, 0)),       # packed params
            pl.BlockSpec(w2.shape, lambda i: (0, 0)),       # w2 (resident)
        ],
        out_specs=pl.BlockSpec((1, tile_b), lambda i: (0, i)),  # lane-dense
        compiler_params=pltpu.CompilerParams(
            dimension_semantics=("parallel",)),
        cost_estimate=cost,
    )(x_t, p, w2_mm)

    return out[0, :].reshape(B, 1)


def init_params(key):
    """PyTorch nn.Linear default init: U(-1/sqrt(fan_in), 1/sqrt(fan_in)),
    weights stored in PyTorch (out_features, in_features) layout."""
    def linear(key, fan_in, fan_out):
        kw, kb = jax.random.split(key)
        bound = 1.0 / jnp.sqrt(jnp.float32(fan_in))
        w = jax.random.uniform(kw, (fan_out, fan_in), jnp.float32,
                               minval=-bound, maxval=bound)
        b = jax.random.uniform(kb, (fan_out,), jnp.float32,
                               minval=-bound, maxval=bound)
        return w, b

    k1, k2, k3 = jax.random.split(key, 3)
    w1, b1 = linear(k1, 4, 400)
    w2, b2 = linear(k2, 400, 300)
    w3_2d, b3 = linear(k3, 300, 1)
    return (w1, b1, w2, b2, w3_2d.reshape(300), b3)


def reference_forward(x, params):
    w1, b1, w2, b2, w3, b3 = params
    h = jnp.maximum(x @ w1.T + b1, 0.0)
    h = jnp.maximum(h @ w2.T + b2, 0.0)
    return jnp.tanh(h @ w3[:, None] + b3)


if __name__ == "__main__":
    key = jax.random.PRNGKey(0)
    kp, kx, kx2 = jax.random.split(key, 3)
    params = init_params(kp)

    # Small batch (state dim = 4, as in the gym CartPole-style DDPG actor).
    batch = 8
    x = jax.random.normal(kx, (batch, 4), jnp.float32)
    ref = reference_forward(x, params)

    # Default path: bf16 fc2 operands, f32 accumulation (looser tolerance).
    out = jax.block_until_ready(policy_actor_forward(x, params))
    assert out.shape == (batch, 1)
    assert jnp.allclose(out, ref, atol=2e-2, rtol=2e-2)

    # f32-operand path still supported.
    out_f32 = jax.block_until_ready(
        policy_actor_forward(x, params, matmul_dtype=jnp.float32))
    assert jnp.allclose(out_f32, ref, atol=2e-2, rtol=2e-2)

    # Larger non-tile-multiple batch: multi-tile grid + ragged last block
    # (no wrapper-side padding), adaptive tile_b gives a 2-step grid.
    batch2 = 600
    x2 = jax.random.normal(kx2, (batch2, 4), jnp.float32)
    out2 = jax.block_until_ready(policy_actor_forward(x2, params))
    ref2 = reference_forward(x2, params)
    assert out2.shape == (batch2, 1)
    assert jnp.allclose(out2, ref2, atol=2e-2, rtol=2e-2)

    print("KERNEL_OK")
</pallas_src>

<mosaic_0001>
module attributes {stable_mosaic.version = 11 : i64} {
  func.func @_policy_actor_kernel(%arg0: i32, %arg1: memref<4x256xf32, #tpu.memory_space<vmem>>, %arg2: memref<400x8xf32, #tpu.memory_space<vmem>>, %arg3: memref<300x400xbf16, #tpu.memory_space<vmem>>, %arg4: memref<1x256xf32, #tpu.memory_space<vmem>>) attributes {dimension_semantics = [#tpu.dimension_semantics<parallel>], iteration_bounds = array<i64: 1>, scalar_prefetch = 0 : i64, scratch_operands = 0 : i64, tpu.core_type = #tpu.core_type<tc>, window_params = [{transform_indices = @transform_0, window_bounds = array<i64: 4, 256>}, {pipeline_mode = #tpu.pipeline_mode<synchronous>, transform_indices = @transform_1, window_bounds = array<i64: 400, 8>}, {pipeline_mode = #tpu.pipeline_mode<synchronous>, transform_indices = @transform_2, window_bounds = array<i64: 300, 400>}, {transform_indices = @transform_3, window_bounds = array<i64: 1, 256>}]} {
    %c0 = arith.constant 0 : index
    %c0_0 = arith.constant 0 : index
    %0 = vector.load %arg1[%c0, %c0_0] : memref<4x256xf32, #tpu.memory_space<vmem>>, vector<4x256xf32>
    %c0_1 = arith.constant 0 : index
    %c0_2 = arith.constant 0 : index
    %1 = vector.load %arg2[%c0_1, %c0_2] : memref<400x8xf32, #tpu.memory_space<vmem>>, vector<400x8xf32>
    %2 = vector.extract_strided_slice %1 {offsets = [0, 0], sizes = [400, 4], strides = [1, 1]} : vector<400x8xf32> to vector<400x4xf32>
    %3 = vector.extract_strided_slice %1 {offsets = [0, 4], sizes = [400, 1], strides = [1, 1]} : vector<400x8xf32> to vector<400x1xf32>
    %4 = vector.extract_strided_slice %1 {offsets = [0, 5], sizes = [300, 1], strides = [1, 1]} : vector<400x8xf32> to vector<300x1xf32>
    %5 = vector.extract_strided_slice %1 {offsets = [0, 6], sizes = [300, 1], strides = [1, 1]} : vector<400x8xf32> to vector<300x1xf32>
    %6 = vector.extract_strided_slice %1 {offsets = [0, 7], sizes = [1, 1], strides = [1, 1]} : vector<400x8xf32> to vector<1x1xf32>
    %7 = vector.extract_strided_slice %2 {offsets = [0, 0], sizes = [400, 1], strides = [1, 1]} : vector<400x4xf32> to vector<400x1xf32>
    %8 = vector.extract_strided_slice %0 {offsets = [0, 0], sizes = [1, 256], strides = [1, 1]} : vector<4x256xf32> to vector<1x256xf32>
    %9 = vector.broadcast %7 : vector<400x1xf32> to vector<400x256xf32>
    %10 = vector.broadcast %8 : vector<1x256xf32> to vector<400x256xf32>
    %11 = arith.mulf %9, %10 : vector<400x256xf32>
    %12 = vector.broadcast %3 : vector<400x1xf32> to vector<400x256xf32>
    %13 = arith.addf %12, %11 : vector<400x256xf32>
    %14 = vector.extract_strided_slice %2 {offsets = [0, 1], sizes = [400, 1], strides = [1, 1]} : vector<400x4xf32> to vector<400x1xf32>
    %15 = vector.extract_strided_slice %0 {offsets = [1, 0], sizes = [1, 256], strides = [1, 1]} : vector<4x256xf32> to vector<1x256xf32>
    %16 = vector.broadcast %14 : vector<400x1xf32> to vector<400x256xf32>
    %17 = vector.broadcast %15 : vector<1x256xf32> to vector<400x256xf32>
    %18 = arith.mulf %16, %17 : vector<400x256xf32>
    %19 = arith.addf %13, %18 : vector<400x256xf32>
    %20 = vector.extract_strided_slice %2 {offsets = [0, 2], sizes = [400, 1], strides = [1, 1]} : vector<400x4xf32> to vector<400x1xf32>
    %21 = vector.extract_strided_slice %0 {offsets = [2, 0], sizes = [1, 256], strides = [1, 1]} : vector<4x256xf32> to vector<1x256xf32>
    %22 = vector.broadcast %20 : vector<400x1xf32> to vector<400x256xf32>
    %23 = vector.broadcast %21 : vector<1x256xf32> to vector<400x256xf32>
    %24 = arith.mulf %22, %23 : vector<400x256xf32>
    %25 = arith.addf %19, %24 : vector<400x256xf32>
    %26 = vector.extract_strided_slice %2 {offsets = [0, 3], sizes = [400, 1], strides = [1, 1]} : vector<400x4xf32> to vector<400x1xf32>
    %27 = vector.extract_strided_slice %0 {offsets = [3, 0], sizes = [1, 256], strides = [1, 1]} : vector<4x256xf32> to vector<1x256xf32>
    %28 = vector.broadcast %26 : vector<400x1xf32> to vector<400x256xf32>
    %29 = vector.broadcast %27 : vector<1x256xf32> to vector<400x256xf32>
    %30 = arith.mulf %28, %29 : vector<400x256xf32>
    %31 = arith.addf %25, %30 : vector<400x256xf32>
    %cst = arith.constant 0.000000e+00 : f32
    %32 = vector.broadcast %cst : f32 to vector<400x256xf32>
    %33 = arith.maximumf %31, %32 : vector<400x256xf32>
    %c0_3 = arith.constant 0 : index
    %c0_4 = arith.constant 0 : index
    %34 = vector.load %arg3[%c0_3, %c0_4] : memref<300x400xbf16, #tpu.memory_space<vmem>>, vector<300x400xbf16>
    %35 = arith.truncf %33 : vector<400x256xf32> to vector<400x256xbf16>
    %cst_5 = arith.constant dense<0.000000e+00> : vector<300x256xf32>
    %36 = tpu.matmul %34, %35, %cst_5 {dimension_numbers = #tpu.dot_dimension_numbers<[1], [0], [0], [1], [0, 0, 1, 1], [], []>} : vector<300x400xbf16>, vector<400x256xbf16>, vector<300x256xf32> -> vector<300x256xf32>
    %37 = vector.broadcast %4 : vector<300x1xf32> to vector<300x256xf32>
    %38 = arith.addf %36, %37 : vector<300x256xf32>
    %cst_6 = arith.constant 0.000000e+00 : f32
    %39 = vector.broadcast %cst_6 : f32 to vector<300x256xf32>
    %40 = arith.maximumf %38, %39 : vector<300x256xf32>
    %41 = vector.broadcast %5 : vector<300x1xf32> to vector<300x256xf32>
    %42 = arith.mulf %41, %40 : vector<300x256xf32>
    %cst_7 = arith.constant dense<0.000000e+00> : vector<256xf32>
    %43 = vector.multi_reduction <add>, %42, %cst_7 [0] : vector<300x256xf32> to vector<256xf32>
    %44 = vector.shape_cast %43 : vector<256xf32> to vector<1x256xf32>
    %45 = vector.broadcast %6 : vector<1x1xf32> to vector<1x256xf32>
    %46 = arith.addf %44, %45 : vector<1x256xf32>
    %47 = math.tanh %46 : vector<1x256xf32>
    %c0_8 = arith.constant 0 : index
    %c0_9 = arith.constant 0 : index
    %48 = vector.load %arg4[%c0_8, %c0_9] : memref<1x256xf32, #tpu.memory_space<vmem>>, vector<1x256xf32>
    tpu.vector_store %arg4[%c0_8, %c0_9], %47 {strides = array<i32>} : memref<1x256xf32, #tpu.memory_space<vmem>>, vector<1x256xf32>,
    return
  }
  func.func @transform_0(%arg0: i32) -> (i32, i32) {
    %c0_i32 = arith.constant 0 : i32
    %c0_i32_0 = arith.constant 0 : i32
    return %c0_i32, %arg0 : i32, i32
  }
  func.func @transform_1(%arg0: i32) -> (i32, i32) {
    %c0_i32 = arith.constant 0 : i32
    %c0_i32_0 = arith.constant 0 : i32
    %c0_i32_1 = arith.constant 0 : i32
    return %c0_i32, %c0_i32_0 : i32, i32
  }
  func.func @transform_2(%arg0: i32) -> (i32, i32) {
    %c0_i32 = arith.constant 0 : i32
    %c0_i32_0 = arith.constant 0 : i32
    %c0_i32_1 = arith.constant 0 : i32
    return %c0_i32, %c0_i32_0 : i32, i32
  }
  func.func @transform_3(%arg0: i32) -> (i32, i32) {
    %c0_i32 = arith.constant 0 : i32
    %c0_i32_0 = arith.constant 0 : i32
    return %c0_i32, %arg0 : i32, i32
  }
}

</mosaic_0001>

<llo_original>
// kernel: tpu_custom_call.1
$region0: #{tpu_custom_call.1}
  #allocation0 [shape = 'u32[]', space=smem, size = 0x4, offset = 0x4, fixed_abs, tag = 'smem constant byte address 0x4 - core index']
  #allocation1 [shape = 'u32[144,128]{1,0:T(1,128)}', space=vmem, size = 0x12000, scoped, tag = 'internal scratch']
  %s0 = inlined_call_operand.vmem [shape: f32[4,8], index: 0, kind: input, shape index: {}]
  %s1 = inlined_call_operand.vmem [shape: f32[400,8], index: 1, kind: input, shape index: {}]
  %s2 = inlined_call_operand.vmem [shape: bf16[300,400], index: 2, kind: input, shape index: {}]
  %s3 = inlined_call_operand.hbm [shape: f32[1,8], index: 3, kind: output, shape index: {}]
  %s4 = sld [smem:[#allocation0]]
  $region22: #{tpu_custom_call.1} parent=0
    _
  %s6 = ssub.s32 1, %s4
  %s7 = scalar_select 0, %s6, %s4
  $region1: #{tpu_custom_call.1} parent=0
    #allocation2 [shape = 'u8[1024]{0}', space=vmem, size = 0x400, scoped, tag = 'output window, operand 0, single buffered']
    #allocation3 [shape = 's32[1]{0}', space=sflag, size = 0x4, scoped, tag = 'scoped memory for tpu_custom_call.1']
    %8 = vsyncpa [#allocation3], 0
    // Predicated region
    $region2: #{tpu_custom_call.1} parent=1 // pred_check
      _
    $region3: #{tpu_custom_call.1} parent=1 // pred_check_branch
      %10 = sbr.rel (0) target = $region5
    $region4: #{tpu_custom_call.1} parent=1 // pred_region
      _
    $region5: #{tpu_custom_call.1} parent=1 // pred_fallthru
      _
    // Predicated region
    $region6: #{tpu_custom_call.1} parent=1 // pred_check
      _
    $region7: #{tpu_custom_call.1} parent=1 // pred_check_branch
      %12 = sbr.rel (0) target = $region9
    $region8: #{tpu_custom_call.1} parent=1 // pred_region
      _
    $region9: #{tpu_custom_call.1} parent=1 // pred_fallthru
      _
    // Predicated region
    $region10: #{tpu_custom_call.1} parent=1 // pred_check
      _
    $region11: #{tpu_custom_call.1} parent=1 // pred_check_branch
      %14 = sbr.rel (0) target = $region13
    $region12: #{tpu_custom_call.1} parent=1 // pred_region
      _
    $region13: #{tpu_custom_call.1} parent=1 // pred_fallthru
      _
    %v16 = vld [vmem:[%s0] sm:$0xff]
    %v17 = vld [vmem:[%s1] sm:$0xff]
    %v18 = vld [vmem:[%s1 + $0x8] sm:$0xff]
    %v19 = vld [vmem:[%s1 + $0x10] sm:$0xff]
    %v20 = vld [vmem:[%s1 + $0x18] sm:$0xff]
    %v21 = vld [vmem:[%s1 + $0x20] sm:$0xff]
    %v22 = vld [vmem:[%s1 + $0x28] sm:$0xff]
    %v23 = vld [vmem:[%s1 + $0x30] sm:$0xff]
    %v24 = vld [vmem:[%s1 + $0x38] sm:$0xff]
    %v25 = vld [vmem:[%s1 + $0x40] sm:$0xff]
    %v26 = vld [vmem:[%s1 + $0x48] sm:$0xff]
    %v27 = vld [vmem:[%s1 + $0x50] sm:$0xff]
    %v28 = vld [vmem:[%s1 + $0x58] sm:$0xff]
    %v29 = vld [vmem:[%s1 + $0x60] sm:$0xff]
    %v30 = vld [vmem:[%s1 + $0x68] sm:$0xff]
    %v31 = vld [vmem:[%s1 + $0x70] sm:$0xff]
    %v32 = vld [vmem:[%s1 + $0x78] sm:$0xff]
    %v33 = vld [vmem:[%s1 + $0x80] sm:$0xff]
    %v34 = vld [vmem:[%s1 + $0x88] sm:$0xff]
    %v35 = vld [vmem:[%s1 + $0x90] sm:$0xff]
    %v36 = vld [vmem:[%s1 + $0x98] sm:$0xff]
    %v37 = vld [vmem:[%s1 + $0xa0] sm:$0xff]
    %v38 = vld [vmem:[%s1 + $0xa8] sm:$0xff]
    %v39 = vld [vmem:[%s1 + $0xb0] sm:$0xff]
    %v40 = vld [vmem:[%s1 + $0xb8] sm:$0xff]
    %v41 = vld [vmem:[%s1 + $0xc0] sm:$0xff]
    %v42 = vld [vmem:[%s1 + $0xc8] sm:$0xff]
    %v43 = vld [vmem:[%s1 + $0xd0] sm:$0xff]
    %v44 = vld [vmem:[%s1 + $0xd8] sm:$0xff]
    %v45 = vld [vmem:[%s1 + $0xe0] sm:$0xff]
    %v46 = vld [vmem:[%s1 + $0xe8] sm:$0xff]
    %v47 = vld [vmem:[%s1 + $0xf0] sm:$0xff]
    %v48 = vld [vmem:[%s1 + $0xf8] sm:$0xff]
    %v49 = vld [vmem:[%s1 + $0x100] sm:$0xff]
    %v50 = vld [vmem:[%s1 + $0x108] sm:$0xff]
    %v51 = vld [vmem:[%s1 + $0x110] sm:$0xff]
    %v52 = vld [vmem:[%s1 + $0x118] sm:$0xff]
    %v53 = vld [vmem:[%s1 + $0x120] sm:$0xff]
    %v54 = vld [vmem:[%s1 + $0x128] sm:$0xff]
    %v55 = vld [vmem:[%s1 + $0x130] sm:$0xff]
    %v56 = vld [vmem:[%s1 + $0x138] sm:$0xff]
    %v57 = vld [vmem:[%s1 + $0x140] sm:$0xff]
    %v58 = vld [vmem:[%s1 + $0x148] sm:$0xff]
    %v59 = vld [vmem:[%s1 + $0x150] sm:$0xff]
    %v60 = vld [vmem:[%s1 + $0x158] sm:$0xff]
    %v61 = vld [vmem:[%s1 + $0x160] sm:$0xff]
    %v62 = vld [vmem:[%s1 + $0x168] sm:$0xff]
    %v63 = vld [vmem:[%s1 + $0x170] sm:$0xff]
    %v64 = vld [vmem:[%s1 + $0x178] sm:$0xff]
    %v65 = vld [vmem:[%s1 + $0x180] sm:$0xff]
    %v66 = vld [vmem:[%s1 + $0x188] sm:$0xff]
    %68 = vset.pattern.permute.xlu0 0
    %69 = vperm.xlu0 %68, %v17
    %v70 = vpop.permute.xlu0 %69
    %73 = vset.pattern.permute.xlu0 0
    %74 = vperm.xlu0 %73, %v18
    %v75 = vpop.permute.xlu0 %74
    %78 = vset.pattern.permute.xlu0 0
    %79 = vperm.xlu0 %78, %v19
    %v80 = vpop.permute.xlu0 %79
    %83 = vset.pattern.permute.xlu0 0
    %84 = vperm.xlu0 %83, %v20
    %v85 = vpop.permute.xlu0 %84
    %88 = vset.pattern.permute.xlu0 0
    %89 = vperm.xlu0 %88, %v21
    %v90 = vpop.permute.xlu0 %89
    %93 = vset.pattern.permute.xlu0 0
    %94 = vperm.xlu0 %93, %v22
    %v95 = vpop.permute.xlu0 %94
    %98 = vset.pattern.permute.xlu0 0
    %99 = vperm.xlu0 %98, %v23
    %v100 = vpop.permute.xlu0 %99
    %103 = vset.pattern.permute.xlu0 0
    %104 = vperm.xlu0 %103, %v24
    %v105 = vpop.permute.xlu0 %104
    %108 = vset.pattern.permute.xlu0 0
    %109 = vperm.xlu0 %108, %v25
    %v110 = vpop.permute.xlu0 %109
    %113 = vset.pattern.permute.xlu0 0
    %114 = vperm.xlu0 %113, %v26
    %v115 = vpop.permute.xlu0 %114
    %118 = vset.pattern.permute.xlu0 0
    %119 = vperm.xlu0 %118, %v27
    %v120 = vpop.permute.xlu0 %119
    %123 = vset.pattern.permute.xlu0 0
    %124 = vperm.xlu0 %123, %v28
    %v125 = vpop.permute.xlu0 %124
    %128 = vset.pattern.permute.xlu0 0
    %129 = vperm.xlu0 %128, %v29
    %v130 = vpop.permute.xlu0 %129
    %133 = vset.pattern.permute.xlu0 0
    %134 = vperm.xlu0 %133, %v30
    %v135 = vpop.permute.xlu0 %134
    %138 = vset.pattern.permute.xlu0 0
    %139 = vperm.xlu0 %138, %v31
    %v140 = vpop.permute.xlu0 %139
    %143 = vset.pattern.permute.xlu0 0
    %144 = vperm.xlu0 %143, %v32
    %v145 = vpop.permute.xlu0 %144
    %148 = vset.pattern.permute.xlu0 0
    %149 = vperm.xlu0 %148, %v33
    %v150 = vpop.permute.xlu0 %149
    %153 = vset.pattern.permute.xlu0 0
    %154 = vperm.xlu0 %153, %v34
    %v155 = vpop.permute.xlu0 %154
    %158 = vset.pattern.permute.xlu0 0
    %159 = vperm.xlu0 %158, %v35
    %v160 = vpop.permute.xlu0 %159
    %163 = vset.pattern.permute.xlu0 0
    %164 = vperm.xlu0 %163, %v36
    %v165 = vpop.permute.xlu0 %164
    %168 = vset.pattern.permute.xlu0 0
    %169 = vperm.xlu0 %168, %v37
    %v170 = vpop.permute.xlu0 %169
    %173 = vset.pattern.permute.xlu0 0
    %174 = vperm.xlu0 %173, %v38
    %v175 = vpop.permute.xlu0 %174
    %178 = vset.pattern.permute.xlu0 0
    %179 = vperm.xlu0 %178, %v39
    %v180 = vpop.permute.xlu0 %179
    %183 = vset.pattern.permute.xlu0 0
    %184 = vperm.xlu0 %183, %v40
    %v185 = vpop.permute.xlu0 %184
    %188 = vset.pattern.permute.xlu0 0
    %189 = vperm.xlu0 %188, %v41
    %v190 = vpop.permute.xlu0 %189
    %193 = vset.pattern.permute.xlu0 0
    %194 = vperm.xlu0 %193, %v42
    %v195 = vpop.permute.xlu0 %194
    %198 = vset.pattern.permute.xlu0 0
    %199 = vperm.xlu0 %198, %v43
    %v200 = vpop.permute.xlu0 %199
    %203 = vset.pattern.permute.xlu0 0
    %204 = vperm.xlu0 %203, %v44
    %v205 = vpop.permute.xlu0 %204
    %208 = vset.pattern.permute.xlu0 0
    %209 = vperm.xlu0 %208, %v45
    %v210 = vpop.permute.xlu0 %209
    %213 = vset.pattern.permute.xlu0 0
    %214 = vperm.xlu0 %213, %v46
    %v215 = vpop.permute.xlu0 %214
    %218 = vset.pattern.permute.xlu0 0
    %219 = vperm.xlu0 %218, %v47
    %v220 = vpop.permute.xlu0 %219
    %223 = vset.pattern.permute.xlu0 0
    %224 = vperm.xlu0 %223, %v48
    %v225 = vpop.permute.xlu0 %224
    %228 = vset.pattern.permute.xlu0 0
    %229 = vperm.xlu0 %228, %v49
    %v230 = vpop.permute.xlu0 %229
    %233 = vset.pattern.permute.xlu0 0
    %234 = vperm.xlu0 %233, %v50
    %v235 = vpop.permute.xlu0 %234
    %238 = vset.pattern.permute.xlu0 0
    %239 = vperm.xlu0 %238, %v51
    %v240 = vpop.permute.xlu0 %239
    %243 = vset.pattern.permute.xlu0 0
    %244 = vperm.xlu0 %243, %v52
    %v245 = vpop.permute.xlu0 %244
    %248 = vset.pattern.permute.xlu0 0
    %249 = vperm.xlu0 %248, %v53
    %v250 = vpop.permute.xlu0 %249
    %253 = vset.pattern.permute.xlu0 0
    %254 = vperm.xlu0 %253, %v54
    %v255 = vpop.permute.xlu0 %254
    %258 = vset.pattern.permute.xlu0 0
    %259 = vperm.xlu0 %258, %v55
    %v260 = vpop.permute.xlu0 %259
    %263 = vset.pattern.permute.xlu0 0
    %264 = vperm.xlu0 %263, %v56
    %v265 = vpop.permute.xlu0 %264
    %268 = vset.pattern.permute.xlu0 0
    %269 = vperm.xlu0 %268, %v57
    %v270 = vpop.permute.xlu0 %269
    %273 = vset.pattern.permute.xlu0 0
    %274 = vperm.xlu0 %273, %v58
    %v275 = vpop.permute.xlu0 %274
    %278 = vset.pattern.permute.xlu0 0
    %279 = vperm.xlu0 %278, %v59
    %v280 = vpop.permute.xlu0 %279
    %283 = vset.pattern.permute.xlu0 0
    %284 = vperm.xlu0 %283, %v60
    %v285 = vpop.permute.xlu0 %284
    %288 = vset.pattern.permute.xlu0 0
    %289 = vperm.xlu0 %288, %v61
    %v290 = vpop.permute.xlu0 %289
    %293 = vset.pattern.permute.xlu0 0
    %294 = vperm.xlu0 %293, %v62
    %v295 = vpop.permute.xlu0 %294
    %298 = vset.pattern.permute.xlu0 0
    %299 = vperm.xlu0 %298, %v63
    %v300 = vpop.permute.xlu0 %299
    %303 = vset.pattern.permute.xlu0 0
    %304 = vperm.xlu0 %303, %v64
    %v305 = vpop.permute.xlu0 %304
    %308 = vset.pattern.permute.xlu0 0
    %309 = vperm.xlu0 %308, %v65
    %v310 = vpop.permute.xlu0 %309
    %313 = vset.pattern.permute.xlu0 0
    %314 = vperm.xlu0 %313, %v66
    %v315 = vpop.permute.xlu0 %314
    %v318 = vlaneseq
    %v319 = vshrl.u32 %v318, 7
    %v320 = vsub.s32 0, %v319
    %v321 = vrot.slane %v16, %v320
    %v322 = vlaneseq
    %v323 = vshrl.u32 %v322, 7
    %v324 = vsub.s32 4, %v323
    %v325 = vrot.slane %v16, %v324
    %v328 = vlaneseq
    %v329 = vshrl.u32 %v328, 7
    %v330 = vsub.s32 0, %v329
    %v331 = vrot.slane %v321, %v330
    %v332 = vlaneseq
    %v333 = vshrl.u32 %v332, 7
    %v334 = vsub.s32 0, %v333
    %v335 = vrot.slane %v325, %v334
    %v336 = vmul.f32 %v70, %v331
    %v337 = vmul.f32 %v70, %v335
    %v338 = vmul.f32 %v75, %v331
    %v339 = vmul.f32 %v75, %v335
    %v340 = vmul.f32 %v80, %v331
    %v341 = vmul.f32 %v80, %v335
    %v342 = vmul.f32 %v85, %v331
    %v343 = vmul.f32 %v85, %v335
    %v344 = vmul.f32 %v90, %v331
    %v345 = vmul.f32 %v90, %v335
    %v346 = vmul.f32 %v95, %v331
    %v347 = vmul.f32 %v95, %v335
    %v348 = vmul.f32 %v100, %v331
    %v349 = vmul.f32 %v100, %v335
    %v350 = vmul.f32 %v105, %v331
    %v351 = vmul.f32 %v105, %v335
    %v352 = vmul.f32 %v110, %v331
    %v353 = vmul.f32 %v110, %v335
    %v354 = vmul.f32 %v115, %v331
    %v355 = vmul.f32 %v115, %v335
    %v356 = vmul.f32 %v120, %v331
    %v357 = vmul.f32 %v120, %v335
    %v358 = vmul.f32 %v125, %v331
    %v359 = vmul.f32 %v125, %v335
    %v360 = vmul.f32 %v130, %v331
    %v361 = vmul.f32 %v130, %v335
    %v362 = vmul.f32 %v135, %v331
    %v363 = vmul.f32 %v135, %v335
    %v364 = vmul.f32 %v140, %v331
    %v365 = vmul.f32 %v140, %v335
    %v366 = vmul.f32 %v145, %v331
    %v367 = vmul.f32 %v145, %v335
    %v368 = vmul.f32 %v150, %v331
    %v369 = vmul.f32 %v150, %v335
    %v370 = vmul.f32 %v155, %v331
    %v371 = vmul.f32 %v155, %v335
    %v372 = vmul.f32 %v160, %v331
    %v373 = vmul.f32 %v160, %v335
    %v374 = vmul.f32 %v165, %v331
    %v375 = vmul.f32 %v165, %v335
    %v376 = vmul.f32 %v170, %v331
    %v377 = vmul.f32 %v170, %v335
    %v378 = vmul.f32 %v175, %v331
    %v379 = vmul.f32 %v175, %v335
    %v380 = vmul.f32 %v180, %v331
    %v381 = vmul.f32 %v180, %v335
    %v382 = vmul.f32 %v185, %v331
    %v383 = vmul.f32 %v185, %v335
    %v384 = vmul.f32 %v190, %v331
    %v385 = vmul.f32 %v190, %v335
    %v386 = vmul.f32 %v195, %v331
    %v387 = vmul.f32 %v195, %v335
    %v388 = vmul.f32 %v200, %v331
    %v389 = vmul.f32 %v200, %v335
    %v390 = vmul.f32 %v205, %v331
    %v391 = vmul.f32 %v205, %v335
    %v392 = vmul.f32 %v210, %v331
    %v393 = vmul.f32 %v210, %v335
    %v394 = vmul.f32 %v215, %v331
    %v395 = vmul.f32 %v215, %v335
    %v396 = vmul.f32 %v220, %v331
    %v397 = vmul.f32 %v220, %v335
    %v398 = vmul.f32 %v225, %v331
    %v399 = vmul.f32 %v225, %v335
    %v400 = vmul.f32 %v230, %v331
    %v401 = vmul.f32 %v230, %v335
    %v402 = vmul.f32 %v235, %v331
    %v403 = vmul.f32 %v235, %v335
    %v404 = vmul.f32 %v240, %v331
    %v405 = vmul.f32 %v240, %v335
    %v406 = vmul.f32 %v245, %v331
    %v407 = vmul.f32 %v245, %v335
    %v408 = vmul.f32 %v250, %v331
    %v409 = vmul.f32 %v250, %v335
    %v410 = vmul.f32 %v255, %v331
    %v411 = vmul.f32 %v255, %v335
    %v412 = vmul.f32 %v260, %v331
    %v413 = vmul.f32 %v260, %v335
    %v414 = vmul.f32 %v265, %v331
    %v415 = vmul.f32 %v265, %v335
    %v416 = vmul.f32 %v270, %v331
    %v417 = vmul.f32 %v270, %v335
    %v418 = vmul.f32 %v275, %v331
    %v419 = vmul.f32 %v275, %v335
    %v420 = vmul.f32 %v280, %v331
    %v421 = vmul.f32 %v280, %v335
    %v422 = vmul.f32 %v285, %v331
    %v423 = vmul.f32 %v285, %v335
    %v424 = vmul.f32 %v290, %v331
    %v425 = vmul.f32 %v290, %v335
    %v426 = vmul.f32 %v295, %v331
    %v427 = vmul.f32 %v295, %v335
    %v428 = vmul.f32 %v300, %v331
    %v429 = vmul.f32 %v300, %v335
    %v430 = vmul.f32 %v305, %v331
    %v431 = vmul.f32 %v305, %v335
    %v432 = vmul.f32 %v310, %v331
    %v433 = vmul.f32 %v310, %v335
    %v434 = vmul.f32 %v315, %v331
    %v435 = vmul.f32 %v315, %v335
    %436 = vset.pattern.permute.xlu0 4
    %437 = vperm.xlu0 %436, %v17
    %v438 = vpop.permute.xlu0 %437
    %440 = vset.pattern.permute.xlu0 4
    %441 = vperm.xlu0 %440, %v18
    %v442 = vpop.permute.xlu0 %441
    %444 = vset.pattern.permute.xlu0 4
    %445 = vperm.xlu0 %444, %v19
    %v446 = vpop.permute.xlu0 %445
    %448 = vset.pattern.permute.xlu0 4
    %449 = vperm.xlu0 %448, %v20
    %v450 = vpop.permute.xlu0 %449
    %452 = vset.pattern.permute.xlu0 4
    %453 = vperm.xlu0 %452, %v21
    %v454 = vpop.permute.xlu0 %453
    %456 = vset.pattern.permute.xlu0 4
    %457 = vperm.xlu0 %456, %v22
    %v458 = vpop.permute.xlu0 %457
    %460 = vset.pattern.permute.xlu0 4
    %461 = vperm.xlu0 %460, %v23
    %v462 = vpop.permute.xlu0 %461
    %464 = vset.pattern.permute.xlu0 4
    %465 = vperm.xlu0 %464, %v24
    %v466 = vpop.permute.xlu0 %465
    %468 = vset.pattern.permute.xlu0 4
    %469 = vperm.xlu0 %468, %v25
    %v470 = vpop.permute.xlu0 %469
    %472 = vset.pattern.permute.xlu0 4
    %473 = vperm.xlu0 %472, %v26
    %v474 = vpop.permute.xlu0 %473
    %476 = vset.pattern.permute.xlu0 4
    %477 = vperm.xlu0 %476, %v27
    %v478 = vpop.permute.xlu0 %477
    %480 = vset.pattern.permute.xlu0 4
    %481 = vperm.xlu0 %480, %v28
    %v482 = vpop.permute.xlu0 %481
    %484 = vset.pattern.permute.xlu0 4
    %485 = vperm.xlu0 %484, %v29
    %v486 = vpop.permute.xlu0 %485
    %488 = vset.pattern.permute.xlu0 4
    %489 = vperm.xlu0 %488, %v30
    %v490 = vpop.permute.xlu0 %489
    %492 = vset.pattern.permute.xlu0 4
    %493 = vperm.xlu0 %492, %v31
    %v494 = vpop.permute.xlu0 %493
    %496 = vset.pattern.permute.xlu0 4
    %497 = vperm.xlu0 %496, %v32
    %v498 = vpop.permute.xlu0 %497
    %500 = vset.pattern.permute.xlu0 4
    %501 = vperm.xlu0 %500, %v33
    %v502 = vpop.permute.xlu0 %501
    %504 = vset.pattern.permute.xlu0 4
    %505 = vperm.xlu0 %504, %v34
    %v506 = vpop.permute.xlu0 %505
    %508 = vset.pattern.permute.xlu0 4
    %509 = vperm.xlu0 %508, %v35
    %v510 = vpop.permute.xlu0 %509
    %512 = vset.pattern.permute.xlu0 4
    %513 = vperm.xlu0 %512, %v36
    %v514 = vpop.permute.xlu0 %513
    %516 = vset.pattern.permute.xlu0 4
    %517 = vperm.xlu0 %516, %v37
    %v518 = vpop.permute.xlu0 %517
    %520 = vset.pattern.permute.xlu0 4
    %521 = vperm.xlu0 %520, %v38
    %v522 = vpop.permute.xlu0 %521
    %524 = vset.pattern.permute.xlu0 4
    %525 = vperm.xlu0 %524, %v39
    %v526 = vpop.permute.xlu0 %525
    %528 = vset.pattern.permute.xlu0 4
    %529 = vperm.xlu0 %528, %v40
    %v530 = vpop.permute.xlu0 %529
    %532 = vset.pattern.permute.xlu0 4
    %533 = vperm.xlu0 %532, %v41
    %v534 = vpop.permute.xlu0 %533
    %536 = vset.pattern.permute.xlu0 4
    %537 = vperm.xlu0 %536, %v42
    %v538 = vpop.permute.xlu0 %537
    %540 = vset.pattern.permute.xlu0 4
    %541 = vperm.xlu0 %540, %v43
    %v542 = vpop.permute.xlu0 %541
    %544 = vset.pattern.permute.xlu0 4
    %545 = vperm.xlu0 %544, %v44
    %v546 = vpop.permute.xlu0 %545
    %548 = vset.pattern.permute.xlu0 4
    %549 = vperm.xlu0 %548, %v45
    %v550 = vpop.permute.xlu0 %549
    %552 = vset.pattern.permute.xlu0 4
    %553 = vperm.xlu0 %552, %v46
    %v554 = vpop.permute.xlu0 %553
    %556 = vset.pattern.permute.xlu0 4
    %557 = vperm.xlu0 %556, %v47
    %v558 = vpop.permute.xlu0 %557
    %560 = vset.pattern.permute.xlu0 4
    %561 = vperm.xlu0 %560, %v48
    %v562 = vpop.permute.xlu0 %561
    %564 = vset.pattern.permute.xlu0 4
    %565 = vperm.xlu0 %564, %v49
    %v566 = vpop.permute.xlu0 %565
    %568 = vset.pattern.permute.xlu0 4
    %569 = vperm.xlu0 %568, %v50
    %v570 = vpop.permute.xlu0 %569
    %572 = vset.pattern.permute.xlu0 4
    %573 = vperm.xlu0 %572, %v51
    %v574 = vpop.permute.xlu0 %573
    %576 = vset.pattern.permute.xlu0 4
    %577 = vperm.xlu0 %576, %v52
    %v578 = vpop.permute.xlu0 %577
    %580 = vset.pattern.permute.xlu0 4
    %581 = vperm.xlu0 %580, %v53
    %v582 = vpop.permute.xlu0 %581
    %584 = vset.pattern.permute.xlu0 4
    %585 = vperm.xlu0 %584, %v54
    %v586 = vpop.permute.xlu0 %585
    %588 = vset.pattern.permute.xlu0 4
    %589 = vperm.xlu0 %588, %v55
    %v590 = vpop.permute.xlu0 %589
    %592 = vset.pattern.permute.xlu0 4
    %593 = vperm.xlu0 %592, %v56
    %v594 = vpop.permute.xlu0 %593
    %596 = vset.pattern.permute.xlu0 4
    %597 = vperm.xlu0 %596, %v57
    %v598 = vpop.permute.xlu0 %597
    %600 = vset.pattern.permute.xlu0 4
    %601 = vperm.xlu0 %600, %v58
    %v602 = vpop.permute.xlu0 %601
    %604 = vset.pattern.permute.xlu0 4
    %605 = vperm.xlu0 %604, %v59
    %v606 = vpop.permute.xlu0 %605
    %608 = vset.pattern.permute.xlu0 4
    %609 = vperm.xlu0 %608, %v60
    %v610 = vpop.permute.xlu0 %609
    %612 = vset.pattern.permute.xlu0 4
    %613 = vperm.xlu0 %612, %v61
    %v614 = vpop.permute.xlu0 %613
    %616 = vset.pattern.permute.xlu0 4
    %617 = vperm.xlu0 %616, %v62
    %v618 = vpop.permute.xlu0 %617
    %620 = vset.pattern.permute.xlu0 4
    %621 = vperm.xlu0 %620, %v63
    %v622 = vpop.permute.xlu0 %621
    %624 = vset.pattern.permute.xlu0 4
    %625 = vperm.xlu0 %624, %v64
    %v626 = vpop.permute.xlu0 %625
    %628 = vset.pattern.permute.xlu0 4
    %629 = vperm.xlu0 %628, %v65
    %v630 = vpop.permute.xlu0 %629
    %632 = vset.pattern.permute.xlu0 4
    %633 = vperm.xlu0 %632, %v66
    %v634 = vpop.permute.xlu0 %633
    %v636 = vadd.f32 %v438, %v336
    %v637 = vadd.f32 %v438, %v337
    %v638 = vadd.f32 %v442, %v338
    %v639 = vadd.f32 %v442, %v339
    %v640 = vadd.f32 %v446, %v340
    %v641 = vadd.f32 %v446, %v341
    %v642 = vadd.f32 %v450, %v342
    %v643 = vadd.f32 %v450, %v343
    %v644 = vadd.f32 %v454, %v344
    %v645 = vadd.f32 %v454, %v345
    %v646 = vadd.f32 %v458, %v346
    %v647 = vadd.f32 %v458, %v347
    %v648 = vadd.f32 %v462, %v348
    %v649 = vadd.f32 %v462, %v349
    %v650 = vadd.f32 %v466, %v350
    %v651 = vadd.f32 %v466, %v351
    %v652 = vadd.f32 %v470, %v352
    %v653 = vadd.f32 %v470, %v353
    %v654 = vadd.f32 %v474, %v354
    %v655 = vadd.f32 %v474, %v355
    %v656 = vadd.f32 %v478, %v356
    %v657 = vadd.f32 %v478, %v357
    %v658 = vadd.f32 %v482, %v358
    %v659 = vadd.f32 %v482, %v359
    %v660 = vadd.f32 %v486, %v360
    %v661 = vadd.f32 %v486, %v361
    %v662 = vadd.f32 %v490, %v362
    %v663 = vadd.f32 %v490, %v363
    %v664 = vadd.f32 %v494, %v364
    %v665 = vadd.f32 %v494, %v365
    %v666 = vadd.f32 %v498, %v366
    %v667 = vadd.f32 %v498, %v367
    %v668 = vadd.f32 %v502, %v368
    %v669 = vadd.f32 %v502, %v369
    %v670 = vadd.f32 %v506, %v370
    %v671 = vadd.f32 %v506, %v371
    %v672 = vadd.f32 %v510, %v372
    %v673 = vadd.f32 %v510, %v373
    %v674 = vadd.f32 %v514, %v374
    %v675 = vadd.f32 %v514, %v375
    %v676 = vadd.f32 %v518, %v376
    %v677 = vadd.f32 %v518, %v377
    %v678 = vadd.f32 %v522, %v378
    %v679 = vadd.f32 %v522, %v379
    %v680 = vadd.f32 %v526, %v380
    %v681 = vadd.f32 %v526, %v381
    %v682 = vadd.f32 %v530, %v382
    %v683 = vadd.f32 %v530, %v383
    %v684 = vadd.f32 %v534, %v384
    %v685 = vadd.f32 %v534, %v385
    %v686 = vadd.f32 %v538, %v386
    %v687 = vadd.f32 %v538, %v387
    %v688 = vadd.f32 %v542, %v388
    %v689 = vadd.f32 %v542, %v389
    %v690 = vadd.f32 %v546, %v390
    %v691 = vadd.f32 %v546, %v391
    %v692 = vadd.f32 %v550, %v392
    %v693 = vadd.f32 %v550, %v393
    %v694 = vadd.f32 %v554, %v394
    %v695 = vadd.f32 %v554, %v395
    %v696 = vadd.f32 %v558, %v396
    %v697 = vadd.f32 %v558, %v397
    %v698 = vadd.f32 %v562, %v398
    %v699 = vadd.f32 %v562, %v399
    %v700 = vadd.f32 %v566, %v400
    %v701 = vadd.f32 %v566, %v401
    %v702 = vadd.f32 %v570, %v402
    %v703 = vadd.f32 %v570, %v403
    %v704 = vadd.f32 %v574, %v404
    %v705 = vadd.f32 %v574, %v405
    %v706 = vadd.f32 %v578, %v406
    %v707 = vadd.f32 %v578, %v407
    %v708 = vadd.f32 %v582, %v408
    %v709 = vadd.f32 %v582, %v409
    %v710 = vadd.f32 %v586, %v410
    %v711 = vadd.f32 %v586, %v411
    %v712 = vadd.f32 %v590, %v412
    %v713 = vadd.f32 %v590, %v413
    %v714 = vadd.f32 %v594, %v414
    %v715 = vadd.f32 %v594, %v415
    %v716 = vadd.f32 %v598, %v416
    %v717 = vadd.f32 %v598, %v417
    %v718 = vadd.f32 %v602, %v418
    %v719 = vadd.f32 %v602, %v419
    %v720 = vadd.f32 %v606, %v420
    %v721 = vadd.f32 %v606, %v421
    %v722 = vadd.f32 %v610, %v422
    %v723 = vadd.f32 %v610, %v423
    %v724 = vadd.f32 %v614, %v424
    %v725 = vadd.f32 %v614, %v425
    %v726 = vadd.f32 %v618, %v426
    %v727 = vadd.f32 %v618, %v427
    %v728 = vadd.f32 %v622, %v428
    %v729 = vadd.f32 %v622, %v429
    %v730 = vadd.f32 %v626, %v430
    %v731 = vadd.f32 %v626, %v431
    %v732 = vadd.f32 %v630, %v432
    %v733 = vadd.f32 %v630, %v433
    %v734 = vadd.f32 %v634, %v434
    %v735 = vadd.f32 %v634, %v435
    %736 = vset.pattern.permute.xlu0 1
    %737 = vperm.xlu0 %736, %v17
    %v738 = vpop.permute.xlu0 %737
    %740 = vset.pattern.permute.xlu0 1
    %741 = vperm.xlu0 %740, %v18
    %v742 = vpop.permute.xlu0 %741
    %744 = vset.pattern.permute.xlu0 1
    %745 = vperm.xlu0 %744, %v19
    %v746 = vpop.permute.xlu0 %745
    %748 = vset.pattern.permute.xlu0 1
    %749 = vperm.xlu0 %748, %v20
    %v750 = vpop.permute.xlu0 %749
    %752 = vset.pattern.permute.xlu0 1
    %753 = vperm.xlu0 %752, %v21
    %v754 = vpop.permute.xlu0 %753
    %756 = vset.pattern.permute.xlu0 1
    %757 = vperm.xlu0 %756, %v22
    %v758 = vpop.permute.xlu0 %757
    %760 = vset.pattern.permute.xlu0 1
    %761 = vperm.xlu0 %760, %v23
    %v762 = vpop.permute.xlu0 %761
    %764 = vset.pattern.permute.xlu0 1
    %765 = vperm.xlu0 %764, %v24
    %v766 = vpop.permute.xlu0 %765
    %768 = vset.pattern.permute.xlu0 1
    %769 = vperm.xlu0 %768, %v25
    %v770 = vpop.permute.xlu0 %769
    %772 = vset.pattern.permute.xlu0 1
    %773 = vperm.xlu0 %772, %v26
    %v774 = vpop.permute.xlu0 %773
    %776 = vset.pattern.permute.xlu0 1
    %777 = vperm.xlu0 %776, %v27
    %v778 = vpop.permute.xlu0 %777
    %780 = vset.pattern.permute.xlu0 1
    %781 = vperm.xlu0 %780, %v28
    %v782 = vpop.permute.xlu0 %781
    %784 = vset.pattern.permute.xlu0 1
    %785 = vperm.xlu0 %784, %v29
    %v786 = vpop.permute.xlu0 %785
    %788 = vset.pattern.permute.xlu0 1
    %789 = vperm.xlu0 %788, %v30
    %v790 = vpop.permute.xlu0 %789
    %792 = vset.pattern.permute.xlu0 1
    %793 = vperm.xlu0 %792, %v31
    %v794 = vpop.permute.xlu0 %793
    %796 = vset.pattern.permute.xlu0 1
    %797 = vperm.xlu0 %796, %v32
    %v798 = vpop.permute.xlu0 %797
    %800 = vset.pattern.permute.xlu0 1
    %801 = vperm.xlu0 %800, %v33
    %v802 = vpop.permute.xlu0 %801
    %804 = vset.pattern.permute.xlu0 1
    %805 = vperm.xlu0 %804, %v34
    %v806 = vpop.permute.xlu0 %805
    %808 = vset.pattern.permute.xlu0 1
    %809 = vperm.xlu0 %808, %v35
    %v810 = vpop.permute.xlu0 %809
    %812 = vset.pattern.permute.xlu0 1
    %813 = vperm.xlu0 %812, %v36
    %v814 = vpop.permute.xlu0 %813
    %816 = vset.pattern.permute.xlu0 1
    %817 = vperm.xlu0 %816, %v37
    %v818 = vpop.permute.xlu0 %817
    %820 = vset.pattern.permute.xlu0 1
    %821 = vperm.xlu0 %820, %v38
    %v822 = vpop.permute.xlu0 %821
    %824 = vset.pattern.permute.xlu0 1
    %825 = vperm.xlu0 %824, %v39
    %v826 = vpop.permute.xlu0 %825
    %828 = vset.pattern.permute.xlu0 1
    %829 = vperm.xlu0 %828, %v40
    %v830 = vpop.permute.xlu0 %829
    %832 = vset.pattern.permute.xlu0 1
    %833 = vperm.xlu0 %832, %v41
    %v834 = vpop.permute.xlu0 %833
    %836 = vset.pattern.permute.xlu0 1
    %837 = vperm.xlu0 %836, %v42
    %v838 = vpop.permute.xlu0 %837
    %840 = vset.pattern.permute.xlu0 1
    %841 = vperm.xlu0 %840, %v43
    %v842 = vpop.permute.xlu0 %841
    %844 = vset.pattern.permute.xlu0 1
    %845 = vperm.xlu0 %844, %v44
    %v846 = vpop.permute.xlu0 %845
    %848 = vset.pattern.permute.xlu0 1
    %849 = vperm.xlu0 %848, %v45
    %v850 = vpop.permute.xlu0 %849
    %852 = vset.pattern.permute.xlu0 1
    %853 = vperm.xlu0 %852, %v46
    %v854 = vpop.permute.xlu0 %853
    %856 = vset.pattern.permute.xlu0 1
    %857 = vperm.xlu0 %856, %v47
    %v858 = vpop.permute.xlu0 %857
    %860 = vset.pattern.permute.xlu0 1
    %861 = vperm.xlu0 %860, %v48
    %v862 = vpop.permute.xlu0 %861
    %864 = vset.pattern.permute.xlu0 1
    %865 = vperm.xlu0 %864, %v49
    %v866 = vpop.permute.xlu0 %865
    %868 = vset.pattern.permute.xlu0 1
    %869 = vperm.xlu0 %868, %v50
    %v870 = vpop.permute.xlu0 %869
    %872 = vset.pattern.permute.xlu0 1
    %873 = vperm.xlu0 %872, %v51
    %v874 = vpop.permute.xlu0 %873
    %876 = vset.pattern.permute.xlu0 1
    %877 = vperm.xlu0 %876, %v52
    %v878 = vpop.permute.xlu0 %877
    %880 = vset.pattern.permute.xlu0 1
    %881 = vperm.xlu0 %880, %v53
    %v882 = vpop.permute.xlu0 %881
    %884 = vset.pattern.permute.xlu0 1
    %885 = vperm.xlu0 %884, %v54
    %v886 = vpop.permute.xlu0 %885
    %888 = vset.pattern.permute.xlu0 1
    %889 = vperm.xlu0 %888, %v55
    %v890 = vpop.permute.xlu0 %889
    %892 = vset.pattern.permute.xlu0 1
    %893 = vperm.xlu0 %892, %v56
    %v894 = vpop.permute.xlu0 %893
    %896 = vset.pattern.permute.xlu0 1
    %897 = vperm.xlu0 %896, %v57
    %v898 = vpop.permute.xlu0 %897
    %900 = vset.pattern.permute.xlu0 1
    %901 = vperm.xlu0 %900, %v58
    %v902 = vpop.permute.xlu0 %901
    %904 = vset.pattern.permute.xlu0 1
    %905 = vperm.xlu0 %904, %v59
    %v906 = vpop.permute.xlu0 %905
    %908 = vset.pattern.permute.xlu0 1
    %909 = vperm.xlu0 %908, %v60
    %v910 = vpop.permute.xlu0 %909
    %912 = vset.pattern.permute.xlu0 1
    %913 = vperm.xlu0 %912, %v61
    %v914 = vpop.permute.xlu0 %913
    %916 = vset.pattern.permute.xlu0 1
    %917 = vperm.xlu0 %916, %v62
    %v918 = vpop.permute.xlu0 %917
    %920 = vset.pattern.permute.xlu0 1
    %921 = vperm.xlu0 %920, %v63
    %v922 = vpop.permute.xlu0 %921
    %924 = vset.pattern.permute.xlu0 1
    %925 = vperm.xlu0 %924, %v64
    %v926 = vpop.permute.xlu0 %925
    %928 = vset.pattern.permute.xlu0 1
    %929 = vperm.xlu0 %928, %v65
    %v930 = vpop.permute.xlu0 %929
    %932 = vset.pattern.permute.xlu0 1
    %933 = vperm.xlu0 %932, %v66
    %v934 = vpop.permute.xlu0 %933
    %v936 = vlaneseq
    %v937 = vshrl.u32 %v936, 7
    %v938 = vsub.s32 1, %v937
    %v939 = vrot.slane %v16, %v938
    %v940 = vlaneseq
    %v941 = vshrl.u32 %v940, 7
    %v942 = vsub.s32 5, %v941
    %v943 = vrot.slane %v16, %v942
    %v946 = vlaneseq
    %v947 = vshrl.u32 %v946, 7
    %v948 = vsub.s32 1, %v947
    %v949 = vrot.slane %v939, %v948
    %v950 = vlaneseq
    %v951 = vshrl.u32 %v950, 7
    %v952 = vsub.s32 1, %v951
    %v953 = vrot.slane %v943, %v952
    %v954 = vmul.f32 %v738, %v949
    %v955 = vmul.f32 %v738, %v953
    %v956 = vmul.f32 %v742, %v949
    %v957 = vmul.f32 %v742, %v953
    %v958 = vmul.f32 %v746, %v949
    %v959 = vmul.f32 %v746, %v953
    %v960 = vmul.f32 %v750, %v949
    %v961 = vmul.f32 %v750, %v953
    %v962 = vmul.f32 %v754, %v949
    %v963 = vmul.f32 %v754, %v953
    %v964 = vmul.f32 %v758, %v949
    %v965 = vmul.f32 %v758, %v953
    %v966 = vmul.f32 %v762, %v949
    %v967 = vmul.f32 %v762, %v953
    %v968 = vmul.f32 %v766, %v949
    %v969 = vmul.f32 %v766, %v953
    %v970 = vmul.f32 %v770, %v949
    %v971 = vmul.f32 %v770, %v953
    %v972 = vmul.f32 %v774, %v949
    %v973 = vmul.f32 %v774, %v953
    %v974 = vmul.f32 %v778, %v949
    %v975 = vmul.f32 %v778, %v953
    %v976 = vmul.f32 %v782, %v949
    %v977 = vmul.f32 %v782, %v953
    %v978 = vmul.f32 %v786, %v949
    %v979 = vmul.f32 %v786, %v953
    %v980 = vmul.f32 %v790, %v949
    %v981 = vmul.f32 %v790, %v953
    %v982 = vmul.f32 %v794, %v949
    %v983 = vmul.f32 %v794, %v953
    %v984 = vmul.f32 %v798, %v949
    %v985 = vmul.f32 %v798, %v953
    %v986 = vmul.f32 %v802, %v949
    %v987 = vmul.f32 %v802, %v953
    %v988 = vmul.f32 %v806, %v949
    %v989 = vmul.f32 %v806, %v953
    %v990 = vmul.f32 %v810, %v949
    %v991 = vmul.f32 %v810, %v953
    %v992 = vmul.f32 %v814, %v949
    %v993 = vmul.f32 %v814, %v953
    %v994 = vmul.f32 %v818, %v949
    %v995 = vmul.f32 %v818, %v953
    %v996 = vmul.f32 %v822, %v949
    %v997 = vmul.f32 %v822, %v953
    %v998 = vmul.f32 %v826, %v949
    %v999 = vmul.f32 %v826, %v953
    %v1000 = vmul.f32 %v830, %v949
    %v1001 = vmul.f32 %v830, %v953
    %v1002 = vmul.f32 %v834, %v949
    %v1003 = vmul.f32 %v834, %v953
    %v1004 = vmul.f32 %v838, %v949
    %v1005 = vmul.f32 %v838, %v953
    %v1006 = vmul.f32 %v842, %v949
    %v1007 = vmul.f32 %v842, %v953
    %v1008 = vmul.f32 %v846, %v949
    %v1009 = vmul.f32 %v846, %v953
    %v1010 = vmul.f32 %v850, %v949
    %v1011 = vmul.f32 %v850, %v953
    %v1012 = vmul.f32 %v854, %v949
    %v1013 = vmul.f32 %v854, %v953
    %v1014 = vmul.f32 %v858, %v949
    %v1015 = vmul.f32 %v858, %v953
    %v1016 = vmul.f32 %v862, %v949
    %v1017 = vmul.f32 %v862, %v953
    %v1018 = vmul.f32 %v866, %v949
    %v1019 = vmul.f32 %v866, %v953
    %v1020 = vmul.f32 %v870, %v949
    %v1021 = vmul.f32 %v870, %v953
    %v1022 = vmul.f32 %v874, %v949
    %v1023 = vmul.f32 %v874, %v953
    %v1024 = vmul.f32 %v878, %v949
    %v1025 = vmul.f32 %v878, %v953
    %v1026 = vmul.f32 %v882, %v949
    %v1027 = vmul.f32 %v882, %v953
    %v1028 = vmul.f32 %v886, %v949
    %v1029 = vmul.f32 %v886, %v953
    %v1030 = vmul.f32 %v890, %v949
    %v1031 = vmul.f32 %v890, %v953
    %v1032 = vmul.f32 %v894, %v949
    %v1033 = vmul.f32 %v894, %v953
    %v1034 = vmul.f32 %v898, %v949
    %v1035 = vmul.f32 %v898, %v953
    %v1036 = vmul.f32 %v902, %v949
    %v1037 = vmul.f32 %v902, %v953
    %v1038 = vmul.f32 %v906, %v949
    %v1039 = vmul.f32 %v906, %v953
    %v1040 = vmul.f32 %v910, %v949
    %v1041 = vmul.f32 %v910, %v953
    %v1042 = vmul.f32 %v914, %v949
    %v1043 = vmul.f32 %v914, %v953
    %v1044 = vmul.f32 %v918, %v949
    %v1045 = vmul.f32 %v918, %v953
    %v1046 = vmul.f32 %v922, %v949
    %v1047 = vmul.f32 %v922, %v953
    %v1048 = vmul.f32 %v926, %v949
    %v1049 = vmul.f32 %v926, %v953
    %v1050 = vmul.f32 %v930, %v949
    %v1051 = vmul.f32 %v930, %v953
    %v1052 = vmul.f32 %v934, %v949
    %v1053 = vmul.f32 %v934, %v953
    %v1054 = vadd.f32 %v636, %v954
    %v1055 = vadd.f32 %v637, %v955
    %v1056 = vadd.f32 %v638, %v956
    %v1057 = vadd.f32 %v639, %v957
    %v1058 = vadd.f32 %v640, %v958
    %v1059 = vadd.f32 %v641, %v959
    %v1060 = vadd.f32 %v642, %v960
    %v1061 = vadd.f32 %v643, %v961
    %v1062 = vadd.f32 %v644, %v962
    %v1063 = vadd.f32 %v645, %v963
    %v1064 = vadd.f32 %v646, %v964
    %v1065 = vadd.f32 %v647, %v965
    %v1066 = vadd.f32 %v648, %v966
    %v1067 = vadd.f32 %v649, %v967
    %v1068 = vadd.f32 %v650, %v968
    %v1069 = vadd.f32 %v651, %v969
    %v1070 = vadd.f32 %v652, %v970
    %v1071 = vadd.f32 %v653, %v971
    %v1072 = vadd.f32 %v654, %v972
    %v1073 = vadd.f32 %v655, %v973
    %v1074 = vadd.f32 %v656, %v974
    %v1075 = vadd.f32 %v657, %v975
    %v1076 = vadd.f32 %v658, %v976
    %v1077 = vadd.f32 %v659, %v977
    %v1078 = vadd.f32 %v660, %v978
    %v1079 = vadd.f32 %v661, %v979
    %v1080 = vadd.f32 %v662, %v980
    %v1081 = vadd.f32 %v663, %v981
    %v1082 = vadd.f32 %v664, %v982
    %v1083 = vadd.f32 %v665, %v983
    %v1084 = vadd.f32 %v666, %v984
    %v1085 = vadd.f32 %v667, %v985
    %v1086 = vadd.f32 %v668, %v986
    %v1087 = vadd.f32 %v669, %v987
    %v1088 = vadd.f32 %v670, %v988
    %v1089 = vadd.f32 %v671, %v989
    %v1090 = vadd.f32 %v672, %v990
    %v1091 = vadd.f32 %v673, %v991
    %v1092 = vadd.f32 %v674, %v992
    %v1093 = vadd.f32 %v675, %v993
    %v1094 = vadd.f32 %v676, %v994
    %v1095 = vadd.f32 %v677, %v995
    %v1096 = vadd.f32 %v678, %v996
    %v1097 = vadd.f32 %v679, %v997
    %v1098 = vadd.f32 %v680, %v998
    %v1099 = vadd.f32 %v681, %v999
    %v1100 = vadd.f32 %v682, %v1000
    %v1101 = vadd.f32 %v683, %v1001
    %v1102 = vadd.f32 %v684, %v1002
    %v1103 = vadd.f32 %v685, %v1003
    %v1104 = vadd.f32 %v686, %v1004
    %v1105 = vadd.f32 %v687, %v1005
    %v1106 = vadd.f32 %v688, %v1006
    %v1107 = vadd.f32 %v689, %v1007
    %v1108 = vadd.f32 %v690, %v1008
    %v1109 = vadd.f32 %v691, %v1009
    %v1110 = vadd.f32 %v692, %v1010
    %v1111 = vadd.f32 %v693, %v1011
    %v1112 = vadd.f32 %v694, %v1012
    %v1113 = vadd.f32 %v695, %v1013
    %v1114 = vadd.f32 %v696, %v1014
    %v1115 = vadd.f32 %v697, %v1015
    %v1116 = vadd.f32 %v698, %v1016
    %v1117 = vadd.f32 %v699, %v1017
    %v1118 = vadd.f32 %v700, %v1018
    %v1119 = vadd.f32 %v701, %v1019
    %v1120 = vadd.f32 %v702, %v1020
    %v1121 = vadd.f32 %v703, %v1021
    %v1122 = vadd.f32 %v704, %v1022
    %v1123 = vadd.f32 %v705, %v1023
    %v1124 = vadd.f32 %v706, %v1024
    %v1125 = vadd.f32 %v707, %v1025
    %v1126 = vadd.f32 %v708, %v1026
    %v1127 = vadd.f32 %v709, %v1027
    %v1128 = vadd.f32 %v710, %v1028
    %v1129 = vadd.f32 %v711, %v1029
    %v1130 = vadd.f32 %v712, %v1030
    %v1131 = vadd.f32 %v713, %v1031
    %v1132 = vadd.f32 %v714, %v1032
    %v1133 = vadd.f32 %v715, %v1033
    %v1134 = vadd.f32 %v716, %v1034
    %v1135 = vadd.f32 %v717, %v1035
    %v1136 = vadd.f32 %v718, %v1036
    %v1137 = vadd.f32 %v719, %v1037
    %v1138 = vadd.f32 %v720, %v1038
    %v1139 = vadd.f32 %v721, %v1039
    %v1140 = vadd.f32 %v722, %v1040
    %v1141 = vadd.f32 %v723, %v1041
    %v1142 = vadd.f32 %v724, %v1042
    %v1143 = vadd.f32 %v725, %v1043
    %v1144 = vadd.f32 %v726, %v1044
    %v1145 = vadd.f32 %v727, %v1045
    %v1146 = vadd.f32 %v728, %v1046
    %v1147 = vadd.f32 %v729, %v1047
    %v1148 = vadd.f32 %v730, %v1048
    %v1149 = vadd.f32 %v731, %v1049
    %v1150 = vadd.f32 %v732, %v1050
    %v1151 = vadd.f32 %v733, %v1051
    %v1152 = vadd.f32 %v734, %v1052
    %v1153 = vadd.f32 %v735, %v1053
    %1154 = vset.pattern.permute.xlu0 2
    %1155 = vperm.xlu0 %1154, %v17
    %v1156 = vpop.permute.xlu0 %1155
    %1158 = vset.pattern.permute.xlu0 2
    %1159 = vperm.xlu0 %1158, %v18
    %v1160 = vpop.permute.xlu0 %1159
    %1162 = vset.pattern.permute.xlu0 2
    %1163 = vperm.xlu0 %1162, %v19
    %v1164 = vpop.permute.xlu0 %1163
    %1166 = vset.pattern.permute.xlu0 2
    %1167 = vperm.xlu0 %1166, %v20
    %v1168 = vpop.permute.xlu0 %1167
    %1170 = vset.pattern.permute.xlu0 2
    %1171 = vperm.xlu0 %1170, %v21
    %v1172 = vpop.permute.xlu0 %1171
    %1174 = vset.pattern.permute.xlu0 2
    %1175 = vperm.xlu0 %1174, %v22
    %v1176 = vpop.permute.xlu0 %1175
    %1178 = vset.pattern.permute.xlu0 2
    %1179 = vperm.xlu0 %1178, %v23
    %v1180 = vpop.permute.xlu0 %1179
    %1182 = vset.pattern.permute.xlu0 2
    %1183 = vperm.xlu0 %1182, %v24
    %v1184 = vpop.permute.xlu0 %1183
    %1186 = vset.pattern.permute.xlu0 2
    %1187 = vperm.xlu0 %1186, %v25
    %v1188 = vpop.permute.xlu0 %1187
    %1190 = vset.pattern.permute.xlu0 2
    %1191 = vperm.xlu0 %1190, %v26
    %v1192 = vpop.permute.xlu0 %1191
    %1194 = vset.pattern.permute.xlu0 2
    %1195 = vperm.xlu0 %1194, %v27
    %v1196 = vpop.permute.xlu0 %1195
    %1198 = vset.pattern.permute.xlu0 2
    %1199 = vperm.xlu0 %1198, %v28
    %v1200 = vpop.permute.xlu0 %1199
    %1202 = vset.pattern.permute.xlu0 2
    %1203 = vperm.xlu0 %1202, %v29
    %v1204 = vpop.permute.xlu0 %1203
    %1206 = vset.pattern.permute.xlu0 2
    %1207 = vperm.xlu0 %1206, %v30
    %v1208 = vpop.permute.xlu0 %1207
    %1210 = vset.pattern.permute.xlu0 2
    %1211 = vperm.xlu0 %1210, %v31
    %v1212 = vpop.permute.xlu0 %1211
    %1214 = vset.pattern.permute.xlu0 2
    %1215 = vperm.xlu0 %1214, %v32
    %v1216 = vpop.permute.xlu0 %1215
    %1218 = vset.pattern.permute.xlu0 2
    %1219 = vperm.xlu0 %1218, %v33
    %v1220 = vpop.permute.xlu0 %1219
    %1222 = vset.pattern.permute.xlu0 2
    %1223 = vperm.xlu0 %1222, %v34
    %v1224 = vpop.permute.xlu0 %1223
    %1226 = vset.pattern.permute.xlu0 2
    %1227 = vperm.xlu0 %1226, %v35
    %v1228 = vpop.permute.xlu0 %1227
    %1230 = vset.pattern.permute.xlu0 2
    %1231 = vperm.xlu0 %1230, %v36
    %v1232 = vpop.permute.xlu0 %1231
    %1234 = vset.pattern.permute.xlu0 2
    %1235 = vperm.xlu0 %1234, %v37
    %v1236 = vpop.permute.xlu0 %1235
    %1238 = vset.pattern.permute.xlu0 2
    %1239 = vperm.xlu0 %1238, %v38
    %v1240 = vpop.permute.xlu0 %1239
    %1242 = vset.pattern.permute.xlu0 2
    %1243 = vperm.xlu0 %1242, %v39
    %v1244 = vpop.permute.xlu0 %1243
    %1246 = vset.pattern.permute.xlu0 2
    %1247 = vperm.xlu0 %1246, %v40
    %v1248 = vpop.permute.xlu0 %1247
    %1250 = vset.pattern.permute.xlu0 2
    %1251 = vperm.xlu0 %1250, %v41
    %v1252 = vpop.permute.xlu0 %1251
    %1254 = vset.pattern.permute.xlu0 2
    %1255 = vperm.xlu0 %1254, %v42
    %v1256 = vpop.permute.xlu0 %1255
    %1258 = vset.pattern.permute.xlu0 2
    %1259 = vperm.xlu0 %1258, %v43
    %v1260 = vpop.permute.xlu0 %1259
    %1262 = vset.pattern.permute.xlu0 2
    %1263 = vperm.xlu0 %1262, %v44
    %v1264 = vpop.permute.xlu0 %1263
    %1266 = vset.pattern.permute.xlu0 2
    %1267 = vperm.xlu0 %1266, %v45
    %v1268 = vpop.permute.xlu0 %1267
    %1270 = vset.pattern.permute.xlu0 2
    %1271 = vperm.xlu0 %1270, %v46
    %v1272 = vpop.permute.xlu0 %1271
    %1274 = vset.pattern.permute.xlu0 2
    %1275 = vperm.xlu0 %1274, %v47
    %v1276 = vpop.permute.xlu0 %1275
    %1278 = vset.pattern.permute.xlu0 2
    %1279 = vperm.xlu0 %1278, %v48
    %v1280 = vpop.permute.xlu0 %1279
    %1282 = vset.pattern.permute.xlu0 2
    %1283 = vperm.xlu0 %1282, %v49
    %v1284 = vpop.permute.xlu0 %1283
    %1286 = vset.pattern.permute.xlu0 2
    %1287 = vperm.xlu0 %1286, %v50
    %v1288 = vpop.permute.xlu0 %1287
    %1290 = vset.pattern.permute.xlu0 2
    %1291 = vperm.xlu0 %1290, %v51
    %v1292 = vpop.permute.xlu0 %1291
    %1294 = vset.pattern.permute.xlu0 2
    %1295 = vperm.xlu0 %1294, %v52
    %v1296 = vpop.permute.xlu0 %1295
    %1298 = vset.pattern.permute.xlu0 2
    %1299 = vperm.xlu0 %1298, %v53
    %v1300 = vpop.permute.xlu0 %1299
    %1302 = vset.pattern.permute.xlu0 2
    %1303 = vperm.xlu0 %1302, %v54
    %v1304 = vpop.permute.xlu0 %1303
    %1306 = vset.pattern.permute.xlu0 2
    %1307 = vperm.xlu0 %1306, %v55
    %v1308 = vpop.permute.xlu0 %1307
    %1310 = vset.pattern.permute.xlu0 2
    %1311 = vperm.xlu0 %1310, %v56
    %v1312 = vpop.permute.xlu0 %1311
    %1314 = vset.pattern.permute.xlu0 2
    %1315 = vperm.xlu0 %1314, %v57
    %v1316 = vpop.permute.xlu0 %1315
    %1318 = vset.pattern.permute.xlu0 2
    %1319 = vperm.xlu0 %1318, %v58
    %v1320 = vpop.permute.xlu0 %1319
    %1322 = vset.pattern.permute.xlu0 2
    %1323 = vperm.xlu0 %1322, %v59
    %v1324 = vpop.permute.xlu0 %1323
    %1326 = vset.pattern.permute.xlu0 2
    %1327 = vperm.xlu0 %1326, %v60
    %v1328 = vpop.permute.xlu0 %1327
    %1330 = vset.pattern.permute.xlu0 2
    %1331 = vperm.xlu0 %1330, %v61
    %v1332 = vpop.permute.xlu0 %1331
    %1334 = vset.pattern.permute.xlu0 2
    %1335 = vperm.xlu0 %1334, %v62
    %v1336 = vpop.permute.xlu0 %1335
    %1338 = vset.pattern.permute.xlu0 2
    %1339 = vperm.xlu0 %1338, %v63
    %v1340 = vpop.permute.xlu0 %1339
    %1342 = vset.pattern.permute.xlu0 2
    %1343 = vperm.xlu0 %1342, %v64
    %v1344 = vpop.permute.xlu0 %1343
    %1346 = vset.pattern.permute.xlu0 2
    %1347 = vperm.xlu0 %1346, %v65
    %v1348 = vpop.permute.xlu0 %1347
    %1350 = vset.pattern.permute.xlu0 2
    %1351 = vperm.xlu0 %1350, %v66
    %v1352 = vpop.permute.xlu0 %1351
    %v1354 = vlaneseq
    %v1355 = vshrl.u32 %v1354, 7
    %v1356 = vsub.s32 2, %v1355
    %v1357 = vrot.slane %v16, %v1356
    %v1358 = vlaneseq
    %v1359 = vshrl.u32 %v1358, 7
    %v1360 = vsub.s32 6, %v1359
    %v1361 = vrot.slane %v16, %v1360
    %v1364 = vlaneseq
    %v1365 = vshrl.u32 %v1364, 7
    %v1366 = vsub.s32 2, %v1365
    %v1367 = vrot.slane %v1357, %v1366
    %v1368 = vlaneseq
    %v1369 = vshrl.u32 %v1368, 7
    %v1370 = vsub.s32 2, %v1369
    %v1371 = vrot.slane %v1361, %v1370
    %v1372 = vmul.f32 %v1156, %v1367
    %v1373 = vmul.f32 %v1156, %v1371
    %v1374 = vmul.f32 %v1160, %v1367
    %v1375 = vmul.f32 %v1160, %v1371
    %v1376 = vmul.f32 %v1164, %v1367
    %v1377 = vmul.f32 %v1164, %v1371
    %v1378 = vmul.f32 %v1168, %v1367
    %v1379 = vmul.f32 %v1168, %v1371
    %v1380 = vmul.f32 %v1172, %v1367
    %v1381 = vmul.f32 %v1172, %v1371
    %v1382 = vmul.f32 %v1176, %v1367
    %v1383 = vmul.f32 %v1176, %v1371
    %v1384 = vmul.f32 %v1180, %v1367
    %v1385 = vmul.f32 %v1180, %v1371
    %v1386 = vmul.f32 %v1184, %v1367
    %v1387 = vmul.f32 %v1184, %v1371
    %v1388 = vmul.f32 %v1188, %v1367
    %v1389 = vmul.f32 %v1188, %v1371
    %v1390 = vmul.f32 %v1192, %v1367
    %v1391 = vmul.f32 %v1192, %v1371
    %v1392 = vmul.f32 %v1196, %v1367
    %v1393 = vmul.f32 %v1196, %v1371
    %v1394 = vmul.f32 %v1200, %v1367
    %v1395 = vmul.f32 %v1200, %v1371
    %v1396 = vmul.f32 %v1204, %v1367
    %v1397 = vmul.f32 %v1204, %v1371
    %v1398 = vmul.f32 %v1208, %v1367
    %v1399 = vmul.f32 %v1208, %v1371
    %v1400 = vmul.f32 %v1212, %v1367
    %v1401 = vmul.f32 %v1212, %v1371
    %v1402 = vmul.f32 %v1216, %v1367
    %v1403 = vmul.f32 %v1216, %v1371
    %v1404 = vmul.f32 %v1220, %v1367
    %v1405 = vmul.f32 %v1220, %v1371
    %v1406 = vmul.f32 %v1224, %v1367
    %v1407 = vmul.f32 %v1224, %v1371
    %v1408 = vmul.f32 %v1228, %v1367
    %v1409 = vmul.f32 %v1228, %v1371
    %v1410 = vmul.f32 %v1232, %v1367
    %v1411 = vmul.f32 %v1232, %v1371
    %v1412 = vmul.f32 %v1236, %v1367
    %v1413 = vmul.f32 %v1236, %v1371
    %v1414 = vmul.f32 %v1240, %v1367
    %v1415 = vmul.f32 %v1240, %v1371
    %v1416 = vmul.f32 %v1244, %v1367
    %v1417 = vmul.f32 %v1244, %v1371
    %v1418 = vmul.f32 %v1248, %v1367
    %v1419 = vmul.f32 %v1248, %v1371
    %v1420 = vmul.f32 %v1252, %v1367
    %v1421 = vmul.f32 %v1252, %v1371
    %v1422 = vmul.f32 %v1256, %v1367
    %v1423 = vmul.f32 %v1256, %v1371
    %v1424 = vmul.f32 %v1260, %v1367
    %v1425 = vmul.f32 %v1260, %v1371
    %v1426 = vmul.f32 %v1264, %v1367
    %v1427 = vmul.f32 %v1264, %v1371
    %v1428 = vmul.f32 %v1268, %v1367
    %v1429 = vmul.f32 %v1268, %v1371
    %v1430 = vmul.f32 %v1272, %v1367
    %v1431 = vmul.f32 %v1272, %v1371
    %v1432 = vmul.f32 %v1276, %v1367
    %v1433 = vmul.f32 %v1276, %v1371
    %v1434 = vmul.f32 %v1280, %v1367
    %v1435 = vmul.f32 %v1280, %v1371
    %v1436 = vmul.f32 %v1284, %v1367
    %v1437 = vmul.f32 %v1284, %v1371
    %v1438 = vmul.f32 %v1288, %v1367
    %v1439 = vmul.f32 %v1288, %v1371
    %v1440 = vmul.f32 %v1292, %v1367
    %v1441 = vmul.f32 %v1292, %v1371
    %v1442 = vmul.f32 %v1296, %v1367
    %v1443 = vmul.f32 %v1296, %v1371
    %v1444 = vmul.f32 %v1300, %v1367
    %v1445 = vmul.f32 %v1300, %v1371
    %v1446 = vmul.f32 %v1304, %v1367
    %v1447 = vmul.f32 %v1304, %v1371
    %v1448 = vmul.f32 %v1308, %v1367
    %v1449 = vmul.f32 %v1308, %v1371
    %v1450 = vmul.f32 %v1312, %v1367
    %v1451 = vmul.f32 %v1312, %v1371
    %v1452 = vmul.f32 %v1316, %v1367
    %v1453 = vmul.f32 %v1316, %v1371
    %v1454 = vmul.f32 %v1320, %v1367
    %v1455 = vmul.f32 %v1320, %v1371
    %v1456 = vmul.f32 %v1324, %v1367
    %v1457 = vmul.f32 %v1324, %v1371
    %v1458 = vmul.f32 %v1328, %v1367
    %v1459 = vmul.f32 %v1328, %v1371
    %v1460 = vmul.f32 %v1332, %v1367
    %v1461 = vmul.f32 %v1332, %v1371
    %v1462 = vmul.f32 %v1336, %v1367
    %v1463 = vmul.f32 %v1336, %v1371
    %v1464 = vmul.f32 %v1340, %v1367
    %v1465 = vmul.f32 %v1340, %v1371
    %v1466 = vmul.f32 %v1344, %v1367
    %v1467 = vmul.f32 %v1344, %v1371
    %v1468 = vmul.f32 %v1348, %v1367
    %v1469 = vmul.f32 %v1348, %v1371
    %v1470 = vmul.f32 %v1352, %v1367
    %v1471 = vmul.f32 %v1352, %v1371
    %v1472 = vadd.f32 %v1054, %v1372
    %v1473 = vadd.f32 %v1055, %v1373
    %v1474 = vadd.f32 %v1056, %v1374
    %v1475 = vadd.f32 %v1057, %v1375
    %v1476 = vadd.f32 %v1058, %v1376
    %v1477 = vadd.f32 %v1059, %v1377
    %v1478 = vadd.f32 %v1060, %v1378
    %v1479 = vadd.f32 %v1061, %v1379
    %v1480 = vadd.f32 %v1062, %v1380
    %v1481 = vadd.f32 %v1063, %v1381
    %v1482 = vadd.f32 %v1064, %v1382
    %v1483 = vadd.f32 %v1065, %v1383
    %v1484 = vadd.f32 %v1066, %v1384
    %v1485 = vadd.f32 %v1067, %v1385
    %v1486 = vadd.f32 %v1068, %v1386
    %v1487 = vadd.f32 %v1069, %v1387
    %v1488 = vadd.f32 %v1070, %v1388
    %v1489 = vadd.f32 %v1071, %v1389
    %v1490 = vadd.f32 %v1072, %v1390
    %v1491 = vadd.f32 %v1073, %v1391
    %v1492 = vadd.f32 %v1074, %v1392
    %v1493 = vadd.f32 %v1075, %v1393
    %v1494 = vadd.f32 %v1076, %v1394
    %v1495 = vadd.f32 %v1077, %v1395
    %v1496 = vadd.f32 %v1078, %v1396
    %v1497 = vadd.f32 %v1079, %v1397
    %v1498 = vadd.f32 %v1080, %v1398
    %v1499 = vadd.f32 %v1081, %v1399
    %v1500 = vadd.f32 %v1082, %v1400
    %v1501 = vadd.f32 %v1083, %v1401
    %v1502 = vadd.f32 %v1084, %v1402
    %v1503 = vadd.f32 %v1085, %v1403
    %v1504 = vadd.f32 %v1086, %v1404
    %v1505 = vadd.f32 %v1087, %v1405
    %v1506 = vadd.f32 %v1088, %v1406
    %v1507 = vadd.f32 %v1089, %v1407
    %v1508 = vadd.f32 %v1090, %v1408
    %v1509 = vadd.f32 %v1091, %v1409
    %v1510 = vadd.f32 %v1092, %v1410
    %v1511 = vadd.f32 %v1093, %v1411
    %v1512 = vadd.f32 %v1094, %v1412
    %v1513 = vadd.f32 %v1095, %v1413
    %v1514 = vadd.f32 %v1096, %v1414
    %v1515 = vadd.f32 %v1097, %v1415
    %v1516 = vadd.f32 %v1098, %v1416
    %v1517 = vadd.f32 %v1099, %v1417
    %v1518 = vadd.f32 %v1100, %v1418
    %v1519 = vadd.f32 %v1101, %v1419
    %v1520 = vadd.f32 %v1102, %v1420
    %v1521 = vadd.f32 %v1103, %v1421
    %v1522 = vadd.f32 %v1104, %v1422
    %v1523 = vadd.f32 %v1105, %v1423
    %v1524 = vadd.f32 %v1106, %v1424
    %v1525 = vadd.f32 %v1107, %v1425
    %v1526 = vadd.f32 %v1108, %v1426
    %v1527 = vadd.f32 %v1109, %v1427
    %v1528 = vadd.f32 %v1110, %v1428
    %v1529 = vadd.f32 %v1111, %v1429
    %v1530 = vadd.f32 %v1112, %v1430
    %v1531 = vadd.f32 %v1113, %v1431
    %v1532 = vadd.f32 %v1114, %v1432
    %v1533 = vadd.f32 %v1115, %v1433
    %v1534 = vadd.f32 %v1116, %v1434
    %v1535 = vadd.f32 %v1117, %v1435
    %v1536 = vadd.f32 %v1118, %v1436
    %v1537 = vadd.f32 %v1119, %v1437
    %v1538 = vadd.f32 %v1120, %v1438
    %v1539 = vadd.f32 %v1121, %v1439
    %v1540 = vadd.f32 %v1122, %v1440
    %v1541 = vadd.f32 %v1123, %v1441
    %v1542 = vadd.f32 %v1124, %v1442
    %v1543 = vadd.f32 %v1125, %v1443
    %v1544 = vadd.f32 %v1126, %v1444
    %v1545 = vadd.f32 %v1127, %v1445
    %v1546 = vadd.f32 %v1128, %v1446
    %v1547 = vadd.f32 %v1129, %v1447
    %v1548 = vadd.f32 %v1130, %v1448
    %v1549 = vadd.f32 %v1131, %v1449
    %v1550 = vadd.f32 %v1132, %v1450
    %v1551 = vadd.f32 %v1133, %v1451
    %v1552 = vadd.f32 %v1134, %v1452
    %v1553 = vadd.f32 %v1135, %v1453
    %v1554 = vadd.f32 %v1136, %v1454
    %v1555 = vadd.f32 %v1137, %v1455
    %v1556 = vadd.f32 %v1138, %v1456
    %v1557 = vadd.f32 %v1139, %v1457
    %v1558 = vadd.f32 %v1140, %v1458
    %v1559 = vadd.f32 %v1141, %v1459
    %v1560 = vadd.f32 %v1142, %v1460
    %v1561 = vadd.f32 %v1143, %v1461
    %v1562 = vadd.f32 %v1144, %v1462
    %v1563 = vadd.f32 %v1145, %v1463
    %v1564 = vadd.f32 %v1146, %v1464
    %v1565 = vadd.f32 %v1147, %v1465
    %v1566 = vadd.f32 %v1148, %v1466
    %v1567 = vadd.f32 %v1149, %v1467
    %v1568 = vadd.f32 %v1150, %v1468
    %v1569 = vadd.f32 %v1151, %v1469
    %v1570 = vadd.f32 %v1152, %v1470
    %v1571 = vadd.f32 %v1153, %v1471
    %1572 = vset.pattern.permute.xlu0 3
    %1573 = vperm.xlu0 %1572, %v17
    %v1574 = vpop.permute.xlu0 %1573
    %1576 = vset.pattern.permute.xlu0 3
    %1577 = vperm.xlu0 %1576, %v18
    %v1578 = vpop.permute.xlu0 %1577
    %1580 = vset.pattern.permute.xlu0 3
    %1581 = vperm.xlu0 %1580, %v19
    %v1582 = vpop.permute.xlu0 %1581
    %1584 = vset.pattern.permute.xlu0 3
    %1585 = vperm.xlu0 %1584, %v20
    %v1586 = vpop.permute.xlu0 %1585
    %1588 = vset.pattern.permute.xlu0 3
    %1589 = vperm.xlu0 %1588, %v21
    %v1590 = vpop.permute.xlu0 %1589
    %1592 = vset.pattern.permute.xlu0 3
    %1593 = vperm.xlu0 %1592, %v22
    %v1594 = vpop.permute.xlu0 %1593
    %1596 = vset.pattern.permute.xlu0 3
    %1597 = vperm.xlu0 %1596, %v23
    %v1598 = vpop.permute.xlu0 %1597
    %1600 = vset.pattern.permute.xlu0 3
    %1601 = vperm.xlu0 %1600, %v24
    %v1602 = vpop.permute.xlu0 %1601
    %1604 = vset.pattern.permute.xlu0 3
    %1605 = vperm.xlu0 %1604, %v25
    %v1606 = vpop.permute.xlu0 %1605
    %1608 = vset.pattern.permute.xlu0 3
    %1609 = vperm.xlu0 %1608, %v26
    %v1610 = vpop.permute.xlu0 %1609
    %1612 = vset.pattern.permute.xlu0 3
    %1613 = vperm.xlu0 %1612, %v27
    %v1614 = vpop.permute.xlu0 %1613
    %1616 = vset.pattern.permute.xlu0 3
    %1617 = vperm.xlu0 %1616, %v28
    %v1618 = vpop.permute.xlu0 %1617
    %1620 = vset.pattern.permute.xlu0 3
    %1621 = vperm.xlu0 %1620, %v29
    %v1622 = vpop.permute.xlu0 %1621
    %1624 = vset.pattern.permute.xlu0 3
    %1625 = vperm.xlu0 %1624, %v30
    %v1626 = vpop.permute.xlu0 %1625
    %1628 = vset.pattern.permute.xlu0 3
    %1629 = vperm.xlu0 %1628, %v31
    %v1630 = vpop.permute.xlu0 %1629
    %1632 = vset.pattern.permute.xlu0 3
    %1633 = vperm.xlu0 %1632, %v32
    %v1634 = vpop.permute.xlu0 %1633
    %1636 = vset.pattern.permute.xlu0 3
    %1637 = vperm.xlu0 %1636, %v33
    %v1638 = vpop.permute.xlu0 %1637
    %1640 = vset.pattern.permute.xlu0 3
    %1641 = vperm.xlu0 %1640, %v34
    %v1642 = vpop.permute.xlu0 %1641
    %1644 = vset.pattern.permute.xlu0 3
    %1645 = vperm.xlu0 %1644, %v35
    %v1646 = vpop.permute.xlu0 %1645
    %1648 = vset.pattern.permute.xlu0 3
    %1649 = vperm.xlu0 %1648, %v36
    %v1650 = vpop.permute.xlu0 %1649
    %1652 = vset.pattern.permute.xlu0 3
    %1653 = vperm.xlu0 %1652, %v37
    %v1654 = vpop.permute.xlu0 %1653
    %1656 = vset.pattern.permute.xlu0 3
    %1657 = vperm.xlu0 %1656, %v38
    %v1658 = vpop.permute.xlu0 %1657
    %1660 = vset.pattern.permute.xlu0 3
    %1661 = vperm.xlu0 %1660, %v39
    %v1662 = vpop.permute.xlu0 %1661
    %1664 = vset.pattern.permute.xlu0 3
    %1665 = vperm.xlu0 %1664, %v40
    %v1666 = vpop.permute.xlu0 %1665
    %1668 = vset.pattern.permute.xlu0 3
    %1669 = vperm.xlu0 %1668, %v41
    %v1670 = vpop.permute.xlu0 %1669
    %1672 = vset.pattern.permute.xlu0 3
    %1673 = vperm.xlu0 %1672, %v42
    %v1674 = vpop.permute.xlu0 %1673
    %1676 = vset.pattern.permute.xlu0 3
    %1677 = vperm.xlu0 %1676, %v43
    %v1678 = vpop.permute.xlu0 %1677
    %1680 = vset.pattern.permute.xlu0 3
    %1681 = vperm.xlu0 %1680, %v44
    %v1682 = vpop.permute.xlu0 %1681
    %1684 = vset.pattern.permute.xlu0 3
    %1685 = vperm.xlu0 %1684, %v45
    %v1686 = vpop.permute.xlu0 %1685
    %1688 = vset.pattern.permute.xlu0 3
    %1689 = vperm.xlu0 %1688, %v46
    %v1690 = vpop.permute.xlu0 %1689
    %1692 = vset.pattern.permute.xlu0 3
    %1693 = vperm.xlu0 %1692, %v47
    %v1694 = vpop.permute.xlu0 %1693
    %1696 = vset.pattern.permute.xlu0 3
    %1697 = vperm.xlu0 %1696, %v48
    %v1698 = vpop.permute.xlu0 %1697
    %1700 = vset.pattern.permute.xlu0 3
    %1701 = vperm.xlu0 %1700, %v49
    %v1702 = vpop.permute.xlu0 %1701
    %1704 = vset.pattern.permute.xlu0 3
    %1705 = vperm.xlu0 %1704, %v50
    %v1706 = vpop.permute.xlu0 %1705
    %1708 = vset.pattern.permute.xlu0 3
    %1709 = vperm.xlu0 %1708, %v51
    %v1710 = vpop.permute.xlu0 %1709
    %1712 = vset.pattern.permute.xlu0 3
    %1713 = vperm.xlu0 %1712, %v52
    %v1714 = vpop.permute.xlu0 %1713
    %1716 = vset.pattern.permute.xlu0 3
    %1717 = vperm.xlu0 %1716, %v53
    %v1718 = vpop.permute.xlu0 %1717
    %1720 = vset.pattern.permute.xlu0 3
    %1721 = vperm.xlu0 %1720, %v54
    %v1722 = vpop.permute.xlu0 %1721
    %1724 = vset.pattern.permute.xlu0 3
    %1725 = vperm.xlu0 %1724, %v55
    %v1726 = vpop.permute.xlu0 %1725
    %1728 = vset.pattern.permute.xlu0 3
    %1729 = vperm.xlu0 %1728, %v56
    %v1730 = vpop.permute.xlu0 %1729
    %1732 = vset.pattern.permute.xlu0 3
    %1733 = vperm.xlu0 %1732, %v57
    %v1734 = vpop.permute.xlu0 %1733
    %1736 = vset.pattern.permute.xlu0 3
    %1737 = vperm.xlu0 %1736, %v58
    %v1738 = vpop.permute.xlu0 %1737
    %1740 = vset.pattern.permute.xlu0 3
    %1741 = vperm.xlu0 %1740, %v59
    %v1742 = vpop.permute.xlu0 %1741
    %1744 = vset.pattern.permute.xlu0 3
    %1745 = vperm.xlu0 %1744, %v60
    %v1746 = vpop.permute.xlu0 %1745
    %1748 = vset.pattern.permute.xlu0 3
    %1749 = vperm.xlu0 %1748, %v61
    %v1750 = vpop.permute.xlu0 %1749
    %1752 = vset.pattern.permute.xlu0 3
    %1753 = vperm.xlu0 %1752, %v62
    %v1754 = vpop.permute.xlu0 %1753
    %1756 = vset.pattern.permute.xlu0 3
    %1757 = vperm.xlu0 %1756, %v63
    %v1758 = vpop.permute.xlu0 %1757
    %1760 = vset.pattern.permute.xlu0 3
    %1761 = vperm.xlu0 %1760, %v64
    %v1762 = vpop.permute.xlu0 %1761
    %1764 = vset.pattern.permute.xlu0 3
    %1765 = vperm.xlu0 %1764, %v65
    %v1766 = vpop.permute.xlu0 %1765
    %1768 = vset.pattern.permute.xlu0 3
    %1769 = vperm.xlu0 %1768, %v66
    %v1770 = vpop.permute.xlu0 %1769
    %v1772 = vlaneseq
    %v1773 = vshrl.u32 %v1772, 7
    %v1774 = vsub.s32 3, %v1773
    %v1775 = vrot.slane %v16, %v1774
    %v1776 = vlaneseq
    %v1777 = vshrl.u32 %v1776, 7
    %v1778 = vsub.s32 7, %v1777
    %v1779 = vrot.slane %v16, %v1778
    %v1782 = vlaneseq
    %v1783 = vshrl.u32 %v1782, 7
    %v1784 = vsub.s32 3, %v1783
    %v1785 = vrot.slane %v1775, %v1784
    %v1786 = vlaneseq
    %v1787 = vshrl.u32 %v1786, 7
    %v1788 = vsub.s32 3, %v1787
    %v1789 = vrot.slane %v1779, %v1788
    %v1790 = vmul.f32 %v1574, %v1785
    %v1791 = vmul.f32 %v1574, %v1789
    %v1792 = vmul.f32 %v1578, %v1785
    %v1793 = vmul.f32 %v1578, %v1789
    %v1794 = vmul.f32 %v1582, %v1785
    %v1795 = vmul.f32 %v1582, %v1789
    %v1796 = vmul.f32 %v1586, %v1785
    %v1797 = vmul.f32 %v1586, %v1789
    %v1798 = vmul.f32 %v1590, %v1785
    %v1799 = vmul.f32 %v1590, %v1789
    %v1800 = vmul.f32 %v1594, %v1785
    %v1801 = vmul.f32 %v1594, %v1789
    %v1802 = vmul.f32 %v1598, %v1785
    %v1803 = vmul.f32 %v1598, %v1789
    %v1804 = vmul.f32 %v1602, %v1785
    %v1805 = vmul.f32 %v1602, %v1789
    %v1806 = vmul.f32 %v1606, %v1785
    %v1807 = vmul.f32 %v1606, %v1789
    %v1808 = vmul.f32 %v1610, %v1785
    %v1809 = vmul.f32 %v1610, %v1789
    %v1810 = vmul.f32 %v1614, %v1785
    %v1811 = vmul.f32 %v1614, %v1789
    %v1812 = vmul.f32 %v1618, %v1785
    %v1813 = vmul.f32 %v1618, %v1789
    %v1814 = vmul.f32 %v1622, %v1785
    %v1815 = vmul.f32 %v1622, %v1789
    %v1816 = vmul.f32 %v1626, %v1785
    %v1817 = vmul.f32 %v1626, %v1789
    %v1818 = vmul.f32 %v1630, %v1785
    %v1819 = vmul.f32 %v1630, %v1789
    %v1820 = vmul.f32 %v1634, %v1785
    %v1821 = vmul.f32 %v1634, %v1789
    %v1822 = vmul.f32 %v1638, %v1785
    %v1823 = vmul.f32 %v1638, %v1789
    %v1824 = vmul.f32 %v1642, %v1785
    %v1825 = vmul.f32 %v1642, %v1789
    %v1826 = vmul.f32 %v1646, %v1785
    %v1827 = vmul.f32 %v1646, %v1789
    %v1828 = vmul.f32 %v1650, %v1785
    %v1829 = vmul.f32 %v1650, %v1789
    %v1830 = vmul.f32 %v1654, %v1785
    %v1831 = vmul.f32 %v1654, %v1789
    %v1832 = vmul.f32 %v1658, %v1785
    %v1833 = vmul.f32 %v1658, %v1789
    %v1834 = vmul.f32 %v1662, %v1785
    %v1835 = vmul.f32 %v1662, %v1789
    %v1836 = vmul.f32 %v1666, %v1785
    %v1837 = vmul.f32 %v1666, %v1789
    %v1838 = vmul.f32 %v1670, %v1785
    %v1839 = vmul.f32 %v1670, %v1789
    %v1840 = vmul.f32 %v1674, %v1785
    %v1841 = vmul.f32 %v1674, %v1789
    %v1842 = vmul.f32 %v1678, %v1785
    %v1843 = vmul.f32 %v1678, %v1789
    %v1844 = vmul.f32 %v1682, %v1785
    %v1845 = vmul.f32 %v1682, %v1789
    %v1846 = vmul.f32 %v1686, %v1785
    %v1847 = vmul.f32 %v1686, %v1789
    %v1848 = vmul.f32 %v1690, %v1785
    %v1849 = vmul.f32 %v1690, %v1789
    %v1850 = vmul.f32 %v1694, %v1785
    %v1851 = vmul.f32 %v1694, %v1789
    %v1852 = vmul.f32 %v1698, %v1785
    %v1853 = vmul.f32 %v1698, %v1789
    %v1854 = vmul.f32 %v1702, %v1785
    %v1855 = vmul.f32 %v1702, %v1789
    %v1856 = vmul.f32 %v1706, %v1785
    %v1857 = vmul.f32 %v1706, %v1789
    %v1858 = vmul.f32 %v1710, %v1785
    %v1859 = vmul.f32 %v1710, %v1789
    %v1860 = vmul.f32 %v1714, %v1785
    %v1861 = vmul.f32 %v1714, %v1789
    %v1862 = vmul.f32 %v1718, %v1785
    %v1863 = vmul.f32 %v1718, %v1789
    %v1864 = vmul.f32 %v1722, %v1785
    %v1865 = vmul.f32 %v1722, %v1789
    %v1866 = vmul.f32 %v1726, %v1785
    %v1867 = vmul.f32 %v1726, %v1789
    %v1868 = vmul.f32 %v1730, %v1785
    %v1869 = vmul.f32 %v1730, %v1789
    %v1870 = vmul.f32 %v1734, %v1785
    %v1871 = vmul.f32 %v1734, %v1789
    %v1872 = vmul.f32 %v1738, %v1785
    %v1873 = vmul.f32 %v1738, %v1789
    %v1874 = vmul.f32 %v1742, %v1785
    %v1875 = vmul.f32 %v1742, %v1789
    %v1876 = vmul.f32 %v1746, %v1785
    %v1877 = vmul.f32 %v1746, %v1789
    %v1878 = vmul.f32 %v1750, %v1785
    %v1879 = vmul.f32 %v1750, %v1789
    %v1880 = vmul.f32 %v1754, %v1785
    %v1881 = vmul.f32 %v1754, %v1789
    %v1882 = vmul.f32 %v1758, %v1785
    %v1883 = vmul.f32 %v1758, %v1789
    %v1884 = vmul.f32 %v1762, %v1785
    %v1885 = vmul.f32 %v1762, %v1789
    %v1886 = vmul.f32 %v1766, %v1785
    %v1887 = vmul.f32 %v1766, %v1789
    %v1888 = vmul.f32 %v1770, %v1785
    %v1889 = vmul.f32 %v1770, %v1789
    %v1890 = vadd.f32 %v1472, %v1790
    %v1891 = vadd.f32 %v1473, %v1791
    %v1892 = vadd.f32 %v1474, %v1792
    %v1893 = vadd.f32 %v1475, %v1793
    %v1894 = vadd.f32 %v1476, %v1794
    %v1895 = vadd.f32 %v1477, %v1795
    %v1896 = vadd.f32 %v1478, %v1796
    %v1897 = vadd.f32 %v1479, %v1797
    %v1898 = vadd.f32 %v1480, %v1798
    %v1899 = vadd.f32 %v1481, %v1799
    %v1900 = vadd.f32 %v1482, %v1800
    %v1901 = vadd.f32 %v1483, %v1801
    %v1902 = vadd.f32 %v1484, %v1802
    %v1903 = vadd.f32 %v1485, %v1803
    %v1904 = vadd.f32 %v1486, %v1804
    %v1905 = vadd.f32 %v1487, %v1805
    %v1906 = vadd.f32 %v1488, %v1806
    %v1907 = vadd.f32 %v1489, %v1807
    %v1908 = vadd.f32 %v1490, %v1808
    %v1909 = vadd.f32 %v1491, %v1809
    %v1910 = vadd.f32 %v1492, %v1810
    %v1911 = vadd.f32 %v1493, %v1811
    %v1912 = vadd.f32 %v1494, %v1812
    %v1913 = vadd.f32 %v1495, %v1813
    %v1914 = vadd.f32 %v1496, %v1814
    %v1915 = vadd.f32 %v1497, %v1815
    %v1916 = vadd.f32 %v1498, %v1816
    %v1917 = vadd.f32 %v1499, %v1817
    %v1918 = vadd.f32 %v1500, %v1818
    %v1919 = vadd.f32 %v1501, %v1819
    %v1920 = vadd.f32 %v1502, %v1820
    %v1921 = vadd.f32 %v1503, %v1821
    %v1922 = vadd.f32 %v1504, %v1822
    %v1923 = vadd.f32 %v1505, %v1823
    %v1924 = vadd.f32 %v1506, %v1824
    %v1925 = vadd.f32 %v1507, %v1825
    %v1926 = vadd.f32 %v1508, %v1826
    %v1927 = vadd.f32 %v1509, %v1827
    %v1928 = vadd.f32 %v1510, %v1828
    %v1929 = vadd.f32 %v1511, %v1829
    %v1930 = vadd.f32 %v1512, %v1830
    %v1931 = vadd.f32 %v1513, %v1831
    %v1932 = vadd.f32 %v1514, %v1832
    %v1933 = vadd.f32 %v1515, %v1833
    %v1934 = vadd.f32 %v1516, %v1834
    %v1935 = vadd.f32 %v1517, %v1835
    %v1936 = vadd.f32 %v1518, %v1836
    %v1937 = vadd.f32 %v1519, %v1837
    %v1938 = vadd.f32 %v1520, %v1838
    %v1939 = vadd.f32 %v1521, %v1839
    %v1940 = vadd.f32 %v1522, %v1840
    %v1941 = vadd.f32 %v1523, %v1841
    %v1942 = vadd.f32 %v1524, %v1842
    %v1943 = vadd.f32 %v1525, %v1843
    %v1944 = vadd.f32 %v1526, %v1844
    %v1945 = vadd.f32 %v1527, %v1845
    %v1946 = vadd.f32 %v1528, %v1846
    %v1947 = vadd.f32 %v1529, %v1847
    %v1948 = vadd.f32 %v1530, %v1848
    %v1949 = vadd.f32 %v1531, %v1849
    %v1950 = vadd.f32 %v1532, %v1850
    %v1951 = vadd.f32 %v1533, %v1851
    %v1952 = vadd.f32 %v1534, %v1852
    %v1953 = vadd.f32 %v1535, %v1853
    %v1954 = vadd.f32 %v1536, %v1854
    %v1955 = vadd.f32 %v1537, %v1855
    %v1956 = vadd.f32 %v1538, %v1856
    %v1957 = vadd.f32 %v1539, %v1857
    %v1958 = vadd.f32 %v1540, %v1858
    %v1959 = vadd.f32 %v1541, %v1859
    %v1960 = vadd.f32 %v1542, %v1860
    %v1961 = vadd.f32 %v1543, %v1861
    %v1962 = vadd.f32 %v1544, %v1862
    %v1963 = vadd.f32 %v1545, %v1863
    %v1964 = vadd.f32 %v1546, %v1864
    %v1965 = vadd.f32 %v1547, %v1865
    %v1966 = vadd.f32 %v1548, %v1866
    %v1967 = vadd.f32 %v1549, %v1867
    %v1968 = vadd.f32 %v1550, %v1868
    %v1969 = vadd.f32 %v1551, %v1869
    %v1970 = vadd.f32 %v1552, %v1870
    %v1971 = vadd.f32 %v1553, %v1871
    %v1972 = vadd.f32 %v1554, %v1872
    %v1973 = vadd.f32 %v1555, %v1873
    %v1974 = vadd.f32 %v1556, %v1874
    %v1975 = vadd.f32 %v1557, %v1875
    %v1976 = vadd.f32 %v1558, %v1876
    %v1977 = vadd.f32 %v1559, %v1877
    %v1978 = vadd.f32 %v1560, %v1878
    %v1979 = vadd.f32 %v1561, %v1879
    %v1980 = vadd.f32 %v1562, %v1880
    %v1981 = vadd.f32 %v1563, %v1881
    %v1982 = vadd.f32 %v1564, %v1882
    %v1983 = vadd.f32 %v1565, %v1883
    %v1984 = vadd.f32 %v1566, %v1884
    %v1985 = vadd.f32 %v1567, %v1885
    %v1986 = vadd.f32 %v1568, %v1886
    %v1987 = vadd.f32 %v1569, %v1887
    %v1988 = vadd.f32 %v1570, %v1888
    %v1989 = vadd.f32 %v1571, %v1889
    %v1990 = vmax.f32 %v1890, 0.0
    %v1991 = vmax.f32 %v1891, 0.0
    %v1992 = vmax.f32 %v1892, 0.0
    %v1993 = vmax.f32 %v1893, 0.0
    %v1994 = vmax.f32 %v1894, 0.0
    %v1995 = vmax.f32 %v1895, 0.0
    %v1996 = vmax.f32 %v1896, 0.0
    %v1997 = vmax.f32 %v1897, 0.0
    %v1998 = vmax.f32 %v1898, 0.0
    %v1999 = vmax.f32 %v1899, 0.0
    %v2000 = vmax.f32 %v1900, 0.0
    %v2001 = vmax.f32 %v1901, 0.0
    %v2002 = vmax.f32 %v1902, 0.0
    %v2003 = vmax.f32 %v1903, 0.0
    %v2004 = vmax.f32 %v1904, 0.0
    %v2005 = vmax.f32 %v1905, 0.0
    %v2006 = vmax.f32 %v1906, 0.0
    %v2007 = vmax.f32 %v1907, 0.0
    %v2008 = vmax.f32 %v1908, 0.0
    %v2009 = vmax.f32 %v1909, 0.0
    %v2010 = vmax.f32 %v1910, 0.0
    %v2011 = vmax.f32 %v1911, 0.0
    %v2012 = vmax.f32 %v1912, 0.0
    %v2013 = vmax.f32 %v1913, 0.0
    %v2014 = vmax.f32 %v1914, 0.0
    %v2015 = vmax.f32 %v1915, 0.0
    %v2016 = vmax.f32 %v1916, 0.0
    %v2017 = vmax.f32 %v1917, 0.0
    %v2018 = vmax.f32 %v1918, 0.0
    %v2019 = vmax.f32 %v1919, 0.0
    %v2020 = vmax.f32 %v1920, 0.0
    %v2021 = vmax.f32 %v1921, 0.0
    %v2022 = vmax.f32 %v1922, 0.0
    %v2023 = vmax.f32 %v1923, 0.0
    %v2024 = vmax.f32 %v1924, 0.0
    %v2025 = vmax.f32 %v1925, 0.0
    %v2026 = vmax.f32 %v1926, 0.0
    %v2027 = vmax.f32 %v1927, 0.0
    %v2028 = vmax.f32 %v1928, 0.0
    %v2029 = vmax.f32 %v1929, 0.0
    %v2030 = vmax.f32 %v1930, 0.0
    %v2031 = vmax.f32 %v1931, 0.0
    %v2032 = vmax.f32 %v1932, 0.0
    %v2033 = vmax.f32 %v1933, 0.0
    %v2034 = vmax.f32 %v1934, 0.0
    %v2035 = vmax.f32 %v1935, 0.0
    %v2036 = vmax.f32 %v1936, 0.0
    %v2037 = vmax.f32 %v1937, 0.0
    %v2038 = vmax.f32 %v1938, 0.0
    %v2039 = vmax.f32 %v1939, 0.0
    %v2040 = vmax.f32 %v1940, 0.0
    %v2041 = vmax.f32 %v1941, 0.0
    %v2042 = vmax.f32 %v1942, 0.0
    %v2043 = vmax.f32 %v1943, 0.0
    %v2044 = vmax.f32 %v1944, 0.0
    %v2045 = vmax.f32 %v1945, 0.0
    %v2046 = vmax.f32 %v1946, 0.0
    %v2047 = vmax.f32 %v1947, 0.0
    %v2048 = vmax.f32 %v1948, 0.0
    %v2049 = vmax.f32 %v1949, 0.0
    %v2050 = vmax.f32 %v1950, 0.0
    %v2051 = vmax.f32 %v1951, 0.0
    %v2052 = vmax.f32 %v1952, 0.0
    %v2053 = vmax.f32 %v1953, 0.0
    %v2054 = vmax.f32 %v1954, 0.0
    %v2055 = vmax.f32 %v1955, 0.0
    %v2056 = vmax.f32 %v1956, 0.0
    %v2057 = vmax.f32 %v1957, 0.0
    %v2058 = vmax.f32 %v1958, 0.0
    %v2059 = vmax.f32 %v1959, 0.0
    %v2060 = vmax.f32 %v1960, 0.0
    %v2061 = vmax.f32 %v1961, 0.0
    %v2062 = vmax.f32 %v1962, 0.0
    %v2063 = vmax.f32 %v1963, 0.0
    %v2064 = vmax.f32 %v1964, 0.0
    %v2065 = vmax.f32 %v1965, 0.0
    %v2066 = vmax.f32 %v1966, 0.0
    %v2067 = vmax.f32 %v1967, 0.0
    %v2068 = vmax.f32 %v1968, 0.0
    %v2069 = vmax.f32 %v1969, 0.0
    %v2070 = vmax.f32 %v1970, 0.0
    %v2071 = vmax.f32 %v1971, 0.0
    %v2072 = vmax.f32 %v1972, 0.0
    %v2073 = vmax.f32 %v1973, 0.0
    %v2074 = vmax.f32 %v1974, 0.0
    %v2075 = vmax.f32 %v1975, 0.0
    %v2076 = vmax.f32 %v1976, 0.0
    %v2077 = vmax.f32 %v1977, 0.0
    %v2078 = vmax.f32 %v1978, 0.0
    %v2079 = vmax.f32 %v1979, 0.0
    %v2080 = vmax.f32 %v1980, 0.0
    %v2081 = vmax.f32 %v1981, 0.0
    %v2082 = vmax.f32 %v1982, 0.0
    %v2083 = vmax.f32 %v1983, 0.0
    %v2084 = vmax.f32 %v1984, 0.0
    %v2085 = vmax.f32 %v1985, 0.0
    %v2086 = vmax.f32 %v1986, 0.0
    %v2087 = vmax.f32 %v1987, 0.0
    %v2088 = vmax.f32 %v1988, 0.0
    %v2089 = vmax.f32 %v1989, 0.0
    %v2090 = vld [vmem:[%s2] sm:$0xff]
    %v2091 = vld [vmem:[%s2 + $0x8] sm:$0xff]
    %v2092 = vld [vmem:[%s2 + $0x10] sm:$0xff]
    %v2093 = vld [vmem:[%s2 + $0x18] sm:$0xff]
    %v2094 = vld [vmem:[%s2 + $0x20] sm:$0xff]
    %v2095 = vld [vmem:[%s2 + $0x28] sm:$0xff]
    %v2096 = vld [vmem:[%s2 + $0x30] sm:$0xff]
    %v2097 = vld [vmem:[%s2 + $0x38] sm:$0xff]
    %v2098 = vld [vmem:[%s2 + $0x40] sm:$0xff]
    %v2099 = vld [vmem:[%s2 + $0x48] sm:$0xff]
    %v2100 = vld [vmem:[%s2 + $0x50] sm:$0xff]
    %v2101 = vld [vmem:[%s2 + $0x58] sm:$0xff]
    %v2102 = vld [vmem:[%s2 + $0x60] sm:$0xff]
    %v2103 = vld [vmem:[%s2 + $0x68] sm:$0xff]
    %v2104 = vld [vmem:[%s2 + $0x70] sm:$0xff]
    %v2105 = vld [vmem:[%s2 + $0x78] sm:$0xff]
    %v2106 = vld [vmem:[%s2 + $0x80] sm:$0xff]
    %v2107 = vld [vmem:[%s2 + $0x88] sm:$0xff]
    %v2108 = vld [vmem:[%s2 + $0x90] sm:$0xff]
    %v2109 = vld [vmem:[%s2 + $0x98] sm:$0xff]
    %v2110 = vld [vmem:[%s2 + $0xa0] sm:$0xff]
    %v2111 = vld [vmem:[%s2 + $0xa8] sm:$0xff]
    %v2112 = vld [vmem:[%s2 + $0xb0] sm:$0xff]
    %v2113 = vld [vmem:[%s2 + $0xb8] sm:$0xff]
    %v2114 = vld [vmem:[%s2 + $0xc0] sm:$0xff]
    %v2115 = vld [vmem:[%s2 + $0xc8] sm:$0xff]
    %v2116 = vld [vmem:[%s2 + $0xd0] sm:$0xff]
    %v2117 = vld [vmem:[%s2 + $0xd8] sm:$0xff]
    %v2118 = vld [vmem:[%s2 + $0xe0] sm:$0xff]
    %v2119 = vld [vmem:[%s2 + $0xe8] sm:$0xff]
    %v2120 = vld [vmem:[%s2 + $0xf0] sm:$0xff]
    %v2121 = vld [vmem:[%s2 + $0xf8] sm:$0xff]
    %v2122 = vld [vmem:[%s2 + $0x100] sm:$0xff]
    %v2123 = vld [vmem:[%s2 + $0x108] sm:$0xff]
    %v2124 = vld [vmem:[%s2 + $0x110] sm:$0xff]
    %v2125 = vld [vmem:[%s2 + $0x118] sm:$0xff]
    %v2126 = vld [vmem:[%s2 + $0x120] sm:$0xff]
    %v2127 = vld [vmem:[%s2 + $0x128] sm:$0xff]
    %v2128 = vld [vmem:[%s2 + $0x130] sm:$0xff]
    %v2129 = vld [vmem:[%s2 + $0x138] sm:$0xff]
    %v2130 = vld [vmem:[%s2 + $0x140] sm:$0xff]
    %v2131 = vld [vmem:[%s2 + $0x148] sm:$0xff]
    %v2132 = vld [vmem:[%s2 + $0x150] sm:$0xff]
    %v2133 = vld [vmem:[%s2 + $0x158] sm:$0xff]
    %v2134 = vld [vmem:[%s2 + $0x160] sm:$0xff]
    %v2135 = vld [vmem:[%s2 + $0x168] sm:$0xff]
    %v2136 = vld [vmem:[%s2 + $0x170] sm:$0xff]
    %v2137 = vld [vmem:[%s2 + $0x178] sm:$0xff]
    %v2138 = vld [vmem:[%s2 + $0x180] sm:$0xff]
    %v2139 = vld [vmem:[%s2 + $0x188] sm:$0xff]
    %v2140 = vld [vmem:[%s2 + $0x190] sm:$0xff]
    %v2141 = vld [vmem:[%s2 + $0x198] sm:$0xff]
    %v2142 = vld [vmem:[%s2 + $0x1a0] sm:$0xff]
    %v2143 = vld [vmem:[%s2 + $0x1a8] sm:$0xff]
    %v2144 = vld [vmem:[%s2 + $0x1b0] sm:$0xff]
    %v2145 = vld [vmem:[%s2 + $0x1b8] sm:$0xff]
    %v2146 = vld [vmem:[%s2 + $0x1c0] sm:$0xff]
    %v2147 = vld [vmem:[%s2 + $0x1c8] sm:$0xff]
    %v2148 = vld [vmem:[%s2 + $0x1d0] sm:$0xff]
    %v2149 = vld [vmem:[%s2 + $0x1d8] sm:$0xff]
    %v2150 = vld [vmem:[%s2 + $0x1e0] sm:$0xff]
    %v2151 = vld [vmem:[%s2 + $0x1e8] sm:$0xff]
    %v2152 = vld [vmem:[%s2 + $0x1f0] sm:$0xff]
    %v2153 = vld [vmem:[%s2 + $0x1f8] sm:$0xff]
    %v2154 = vld [vmem:[%s2 + $0x200] sm:$0xff]
    %v2155 = vld [vmem:[%s2 + $0x208] sm:$0xff]
    %v2156 = vld [vmem:[%s2 + $0x210] sm:$0xff]
    %v2157 = vld [vmem:[%s2 + $0x218] sm:$0xff]
    %v2158 = vld [vmem:[%s2 + $0x220] sm:$0xff]
    %v2159 = vld [vmem:[%s2 + $0x228] sm:$0xff]
    %v2160 = vld [vmem:[%s2 + $0x230] sm:$0xff]
    %v2161 = vld [vmem:[%s2 + $0x238] sm:$0xff]
    %v2162 = vld [vmem:[%s2 + $0x240] sm:$0xff]
    %v2163 = vld [vmem:[%s2 + $0x248] sm:$0xff]
    %v2164 = vld [vmem:[%s2 + $0x250] sm:$0x33]
    %v2165 = vld [vmem:[%s2 + $0x258] sm:$0x33]
    %v2166 = vpack.c.bf16 %v1992, %v1990
    %v2167 = vpack.c.bf16 %v1993, %v1991
    %v2168 = vpack.c.bf16 %v1996, %v1994
    %v2169 = vpack.c.bf16 %v1997, %v1995
    %v2170 = vpack.c.bf16 %v2000, %v1998
    %v2171 = vpack.c.bf16 %v2001, %v1999
    %v2172 = vpack.c.bf16 %v2004, %v2002
    %v2173 = vpack.c.bf16 %v2005, %v2003
    %v2174 = vpack.c.bf16 %v2008, %v2006
    %v2175 = vpack.c.bf16 %v2009, %v2007
    %v2176 = vpack.c.bf16 %v2012, %v2010
    %v2177 = vpack.c.bf16 %v2013, %v2011
    %v2178 = vpack.c.bf16 %v2016, %v2014
    %v2179 = vpack.c.bf16 %v2017, %v2015
    %v2180 = vpack.c.bf16 %v2020, %v2018
    %v2181 = vpack.c.bf16 %v2021, %v2019
    %v2182 = vpack.c.bf16 %v2024, %v2022
    %v2183 = vpack.c.bf16 %v2025, %v2023
    %v2184 = vpack.c.bf16 %v2028, %v2026
    %v2185 = vpack.c.bf16 %v2029, %v2027
    %v2186 = vpack.c.bf16 %v2032, %v2030
    %v2187 = vpack.c.bf16 %v2033, %v2031
    %v2188 = vpack.c.bf16 %v2036, %v2034
    %v2189 = vpack.c.bf16 %v2037, %v2035
    %v2190 = vpack.c.bf16 %v2040, %v2038
    %v2191 = vpack.c.bf16 %v2041, %v2039
    %v2192 = vpack.c.bf16 %v2044, %v2042
    %v2193 = vpack.c.bf16 %v2045, %v2043
    %v2194 = vpack.c.bf16 %v2048, %v2046
    %v2195 = vpack.c.bf16 %v2049, %v2047
    %v2196 = vpack.c.bf16 %v2052, %v2050
    %v2197 = vpack.c.bf16 %v2053, %v2051
    %v2198 = vpack.c.bf16 %v2056, %v2054
    %v2199 = vpack.c.bf16 %v2057, %v2055
    %v2200 = vpack.c.bf16 %v2060, %v2058
    %v2201 = vpack.c.bf16 %v2061, %v2059
    %v2202 = vpack.c.bf16 %v2064, %v2062
    %v2203 = vpack.c.bf16 %v2065, %v2063
    %v2204 = vpack.c.bf16 %v2068, %v2066
    %v2205 = vpack.c.bf16 %v2069, %v2067
    %v2206 = vpack.c.bf16 %v2072, %v2070
    %v2207 = vpack.c.bf16 %v2073, %v2071
    %v2208 = vpack.c.bf16 %v2076, %v2074
    %v2209 = vpack.c.bf16 %v2077, %v2075
    %v2210 = vpack.c.bf16 %v2080, %v2078
    %v2211 = vpack.c.bf16 %v2081, %v2079
    %v2212 = vpack.c.bf16 %v2084, %v2082
    %v2213 = vpack.c.bf16 %v2085, %v2083
    %v2214 = vpack.c.bf16 %v2088, %v2086
    %v2215 = vpack.c.bf16 %v2089, %v2087
    %2216 = vset.pattern.permute.xlu0 5
    %2217 = vperm.xlu0 %2216, %v17
    %v2218 = vpop.permute.xlu0 %2217
    %2220 = vset.pattern.permute.xlu0 5
    %2221 = vperm.xlu0 %2220, %v18
    %v2222 = vpop.permute.xlu0 %2221
    %2224 = vset.pattern.permute.xlu0 5
    %2225 = vperm.xlu0 %2224, %v19
    %v2226 = vpop.permute.xlu0 %2225
    %2228 = vset.pattern.permute.xlu0 5
    %2229 = vperm.xlu0 %2228, %v20
    %v2230 = vpop.permute.xlu0 %2229
    %2232 = vset.pattern.permute.xlu0 5
    %2233 = vperm.xlu0 %2232, %v21
    %v2234 = vpop.permute.xlu0 %2233
    %2236 = vset.pattern.permute.xlu0 5
    %2237 = vperm.xlu0 %2236, %v22
    %v2238 = vpop.permute.xlu0 %2237
    %2240 = vset.pattern.permute.xlu0 5
    %2241 = vperm.xlu0 %2240, %v23
    %v2242 = vpop.permute.xlu0 %2241
    %2244 = vset.pattern.permute.xlu0 5
    %2245 = vperm.xlu0 %2244, %v24
    %v2246 = vpop.permute.xlu0 %2245
    %2248 = vset.pattern.permute.xlu0 5
    %2249 = vperm.xlu0 %2248, %v25
    %v2250 = vpop.permute.xlu0 %2249
    %2252 = vset.pattern.permute.xlu0 5
    %2253 = vperm.xlu0 %2252, %v26
    %v2254 = vpop.permute.xlu0 %2253
    %2256 = vset.pattern.permute.xlu0 5
    %2257 = vperm.xlu0 %2256, %v27
    %v2258 = vpop.permute.xlu0 %2257
    %2260 = vset.pattern.permute.xlu0 5
    %2261 = vperm.xlu0 %2260, %v28
    %v2262 = vpop.permute.xlu0 %2261
    %2264 = vset.pattern.permute.xlu0 5
    %2265 = vperm.xlu0 %2264, %v29
    %v2266 = vpop.permute.xlu0 %2265
    %2268 = vset.pattern.permute.xlu0 5
    %2269 = vperm.xlu0 %2268, %v30
    %v2270 = vpop.permute.xlu0 %2269
    %2272 = vset.pattern.permute.xlu0 5
    %2273 = vperm.xlu0 %2272, %v31
    %v2274 = vpop.permute.xlu0 %2273
    %2276 = vset.pattern.permute.xlu0 5
    %2277 = vperm.xlu0 %2276, %v32
    %v2278 = vpop.permute.xlu0 %2277
    %2280 = vset.pattern.permute.xlu0 5
    %2281 = vperm.xlu0 %2280, %v33
    %v2282 = vpop.permute.xlu0 %2281
    %2284 = vset.pattern.permute.xlu0 5
    %2285 = vperm.xlu0 %2284, %v34
    %v2286 = vpop.permute.xlu0 %2285
    %2288 = vset.pattern.permute.xlu0 5
    %2289 = vperm.xlu0 %2288, %v35
    %v2290 = vpop.permute.xlu0 %2289
    %2292 = vset.pattern.permute.xlu0 5
    %2293 = vperm.xlu0 %2292, %v36
    %v2294 = vpop.permute.xlu0 %2293
    %2296 = vset.pattern.permute.xlu0 5
    %2297 = vperm.xlu0 %2296, %v37
    %v2298 = vpop.permute.xlu0 %2297
    %2300 = vset.pattern.permute.xlu0 5
    %2301 = vperm.xlu0 %2300, %v38
    %v2302 = vpop.permute.xlu0 %2301
    %2304 = vset.pattern.permute.xlu0 5
    %2305 = vperm.xlu0 %2304, %v39
    %v2306 = vpop.permute.xlu0 %2305
    %2308 = vset.pattern.permute.xlu0 5
    %2309 = vperm.xlu0 %2308, %v40
    %v2310 = vpop.permute.xlu0 %2309
    %2312 = vset.pattern.permute.xlu0 5
    %2313 = vperm.xlu0 %2312, %v41
    %v2314 = vpop.permute.xlu0 %2313
    %2316 = vset.pattern.permute.xlu0 5
    %2317 = vperm.xlu0 %2316, %v42
    %v2318 = vpop.permute.xlu0 %2317
    %2320 = vset.pattern.permute.xlu0 5
    %2321 = vperm.xlu0 %2320, %v43
    %v2322 = vpop.permute.xlu0 %2321
    %2324 = vset.pattern.permute.xlu0 5
    %2325 = vperm.xlu0 %2324, %v44
    %v2326 = vpop.permute.xlu0 %2325
    %2328 = vset.pattern.permute.xlu0 5
    %2329 = vperm.xlu0 %2328, %v45
    %v2330 = vpop.permute.xlu0 %2329
    %2332 = vset.pattern.permute.xlu0 5
    %2333 = vperm.xlu0 %2332, %v46
    %v2334 = vpop.permute.xlu0 %2333
    %2336 = vset.pattern.permute.xlu0 5
    %2337 = vperm.xlu0 %2336, %v47
    %v2338 = vpop.permute.xlu0 %2337
    %2340 = vset.pattern.permute.xlu0 5
    %2341 = vperm.xlu0 %2340, %v48
    %v2342 = vpop.permute.xlu0 %2341
    %2344 = vset.pattern.permute.xlu0 5
    %2345 = vperm.xlu0 %2344, %v49
    %v2346 = vpop.permute.xlu0 %2345
    %2348 = vset.pattern.permute.xlu0 5
    %2349 = vperm.xlu0 %2348, %v50
    %v2350 = vpop.permute.xlu0 %2349
    %2352 = vset.pattern.permute.xlu0 5
    %2353 = vperm.xlu0 %2352, %v51
    %v2354 = vpop.permute.xlu0 %2353
    %2356 = vset.pattern.permute.xlu0 5
    %2357 = vperm.xlu0 %2356, %v52
    %v2358 = vpop.permute.xlu0 %2357
    %2360 = vset.pattern.permute.xlu0 5
    %2361 = vperm.xlu0 %2360, %v53
    %v2362 = vpop.permute.xlu0 %2361
    %2364 = vset.pattern.permute.xlu0 5
    %2365 = vperm.xlu0 %2364, %v54
    %v2366 = vpop.permute.xlu0 %2365
    %v2444 = vunpack.c.l.b16 %v2090
    %v2445 = vunpack.c.h.b16 %v2090
    %v2446 = vunpack.c.l.b16 %v2091
    %v2447 = vunpack.c.h.b16 %v2091
    %v2448 = vunpack.c.l.b16 %v2092
    %v2449 = vunpack.c.h.b16 %v2092
    %v2450 = vunpack.c.l.b16 %v2093
    %v2451 = vunpack.c.h.b16 %v2093
    %v2452 = vunpack.c.l.b16 %v2094
    %v2453 = vunpack.c.h.b16 %v2094
    %v2454 = vunpack.c.l.b16 %v2095
    %v2455 = vunpack.c.h.b16 %v2095
    %v2456 = vunpack.c.l.b16 %v2096
    %v2457 = vunpack.c.h.b16 %v2096
    %v2458 = vunpack.c.l.b16 %v2097
    %v2459 = vunpack.c.h.b16 %v2097
    %v2460 = vunpack.c.l.b16 %v2098
    %v2461 = vunpack.c.h.b16 %v2098
    %v2462 = vunpack.c.l.b16 %v2099
    %v2463 = vunpack.c.h.b16 %v2099
    %v2464 = vunpack.c.l.b16 %v2100
    %v2465 = vunpack.c.h.b16 %v2100
    %v2466 = vunpack.c.l.b16 %v2101
    %v2467 = vunpack.c.h.b16 %v2101
    %v2468 = vunpack.c.l.b16 %v2102
    %v2469 = vunpack.c.h.b16 %v2102
    %v2470 = vunpack.c.l.b16 %v2103
    %v2471 = vunpack.c.h.b16 %v2103
    %v2472 = vunpack.c.l.b16 %v2104
    %v2473 = vunpack.c.h.b16 %v2104
    %v2474 = vunpack.c.l.b16 %v2105
    %v2475 = vunpack.c.h.b16 %v2105
    %v2476 = vunpack.c.l.b16 %v2106
    %v2477 = vunpack.c.h.b16 %v2106
    %v2478 = vunpack.c.l.b16 %v2107
    %v2479 = vunpack.c.h.b16 %v2107
    %v2480 = vunpack.c.l.b16 %v2108
    %v2481 = vunpack.c.h.b16 %v2108
    %v2482 = vunpack.c.l.b16 %v2109
    %v2483 = vunpack.c.h.b16 %v2109
    %v2484 = vunpack.c.l.b16 %v2110
    %v2485 = vunpack.c.h.b16 %v2110
    %v2486 = vunpack.c.l.b16 %v2111
    %v2487 = vunpack.c.h.b16 %v2111
    %v2488 = vunpack.c.l.b16 %v2112
    %v2489 = vunpack.c.h.b16 %v2112
    %v2490 = vunpack.c.l.b16 %v2113
    %v2491 = vunpack.c.h.b16 %v2113
    %v2492 = vunpack.c.l.b16 %v2114
    %v2493 = vunpack.c.h.b16 %v2114
    %v2494 = vunpack.c.l.b16 %v2115
    %v2495 = vunpack.c.h.b16 %v2115
    %v2496 = vunpack.c.l.b16 %v2116
    %v2497 = vunpack.c.h.b16 %v2116
    %v2498 = vunpack.c.l.b16 %v2117
    %v2499 = vunpack.c.h.b16 %v2117
    %v2500 = vunpack.c.l.b16 %v2118
    %v2501 = vunpack.c.h.b16 %v2118
    %v2502 = vunpack.c.l.b16 %v2119
    %v2503 = vunpack.c.h.b16 %v2119
    %v2504 = vunpack.c.l.b16 %v2120
    %v2505 = vunpack.c.h.b16 %v2120
    %v2506 = vunpack.c.l.b16 %v2121
    %v2507 = vunpack.c.h.b16 %v2121
    %v2508 = vunpack.c.l.b16 %v2122
    %v2509 = vunpack.c.h.b16 %v2122
    %v2510 = vunpack.c.l.b16 %v2123
    %v2511 = vunpack.c.h.b16 %v2123
    %v2512 = vunpack.c.l.b16 %v2124
    %v2513 = vunpack.c.h.b16 %v2124
    %v2514 = vunpack.c.l.b16 %v2125
    %v2515 = vunpack.c.h.b16 %v2125
    %v2516 = vunpack.c.l.b16 %v2126
    %v2517 = vunpack.c.h.b16 %v2126
    %v2518 = vunpack.c.l.b16 %v2127
    %v2519 = vunpack.c.h.b16 %v2127
    %v2520 = vunpack.c.l.b16 %v2128
    %v2521 = vunpack.c.h.b16 %v2128
    %v2522 = vunpack.c.l.b16 %v2129
    %v2523 = vunpack.c.h.b16 %v2129
    %v2524 = vunpack.c.l.b16 %v2130
    %v2525 = vunpack.c.h.b16 %v2130
    %v2526 = vunpack.c.l.b16 %v2131
    %v2527 = vunpack.c.h.b16 %v2131
    %v2528 = vunpack.c.l.b16 %v2132
    %v2529 = vunpack.c.h.b16 %v2132
    %v2530 = vunpack.c.l.b16 %v2133
    %v2531 = vunpack.c.h.b16 %v2133
    %v2532 = vunpack.c.l.b16 %v2134
    %v2533 = vunpack.c.h.b16 %v2134
    %v2534 = vunpack.c.l.b16 %v2135
    %v2535 = vunpack.c.h.b16 %v2135
    %v2536 = vunpack.c.l.b16 %v2136
    %v2537 = vunpack.c.h.b16 %v2136
    %v2538 = vunpack.c.l.b16 %v2137
    %v2539 = vunpack.c.h.b16 %v2137
    %v2540 = vunpack.c.l.b16 %v2138
    %v2541 = vunpack.c.h.b16 %v2138
    %v2542 = vunpack.c.l.b16 %v2139
    %v2543 = vunpack.c.h.b16 %v2139
    %v2544 = vunpack.c.l.b16 %v2140
    %v2545 = vunpack.c.h.b16 %v2140
    %v2546 = vunpack.c.l.b16 %v2141
    %v2547 = vunpack.c.h.b16 %v2141
    %v2548 = vunpack.c.l.b16 %v2142
    %v2549 = vunpack.c.h.b16 %v2142
    %v2550 = vunpack.c.l.b16 %v2143
    %v2551 = vunpack.c.h.b16 %v2143
    %v2552 = vunpack.c.l.b16 %v2144
    %v2553 = vunpack.c.h.b16 %v2144
    %v2554 = vunpack.c.l.b16 %v2145
    %v2555 = vunpack.c.h.b16 %v2145
    %v2556 = vunpack.c.l.b16 %v2146
    %v2557 = vunpack.c.h.b16 %v2146
    %v2558 = vunpack.c.l.b16 %v2147
    %v2559 = vunpack.c.h.b16 %v2147
    %v2560 = vunpack.c.l.b16 %v2148
    %v2561 = vunpack.c.h.b16 %v2148
    %v2562 = vunpack.c.l.b16 %v2149
    %v2563 = vunpack.c.h.b16 %v2149
    %v2564 = vunpack.c.l.b16 %v2150
    %v2565 = vunpack.c.h.b16 %v2150
    %v2566 = vunpack.c.l.b16 %v2151
    %v2567 = vunpack.c.h.b16 %v2151
    %v2568 = vunpack.c.l.b16 %v2152
    %v2569 = vunpack.c.h.b16 %v2152
    %v2570 = vunpack.c.l.b16 %v2153
    %v2571 = vunpack.c.h.b16 %v2153
    %v2572 = vunpack.c.l.b16 %v2154
    %v2573 = vunpack.c.h.b16 %v2154
    %v2574 = vunpack.c.l.b16 %v2155
    %v2575 = vunpack.c.h.b16 %v2155
    %v2576 = vunpack.c.l.b16 %v2156
    %v2577 = vunpack.c.h.b16 %v2156
    %v2578 = vunpack.c.l.b16 %v2157
    %v2579 = vunpack.c.h.b16 %v2157
    %v2580 = vunpack.c.l.b16 %v2158
    %v2581 = vunpack.c.h.b16 %v2158
    %v2582 = vunpack.c.l.b16 %v2159
    %v2583 = vunpack.c.h.b16 %v2159
    %v2584 = vunpack.c.l.b16 %v2160
    %v2585 = vunpack.c.h.b16 %v2160
    %v2586 = vunpack.c.l.b16 %v2161
    %v2587 = vunpack.c.h.b16 %v2161
    %v2588 = vunpack.c.l.b16 %v2162
    %v2589 = vunpack.c.h.b16 %v2162
    %v2590 = vunpack.c.l.b16 %v2163
    %v2591 = vunpack.c.h.b16 %v2163
    %v2592 = vunpack.c.l.b16 %v2164
    %v2593 = vunpack.c.h.b16 %v2164
    %v2594 = vunpack.c.l.b16 %v2165
    %v2595 = vunpack.c.h.b16 %v2165
    %v2596 = vpack.c.b16 %v2448, %v2444
    %v2597 = vpack.c.b16 %v2449, %v2445
    %v2598 = vpack.c.b16 %v2450, %v2446
    %v2599 = vpack.c.b16 %v2451, %v2447
    %v2600 = vpack.c.b16 %v2456, %v2452
    %v2601 = vpack.c.b16 %v2457, %v2453
    %v2602 = vpack.c.b16 %v2458, %v2454
    %v2603 = vpack.c.b16 %v2459, %v2455
    %v2604 = vpack.c.b16 %v2464, %v2460
    %v2605 = vpack.c.b16 %v2465, %v2461
    %v2606 = vpack.c.b16 %v2466, %v2462
    %v2607 = vpack.c.b16 %v2467, %v2463
    %v2608 = vpack.c.b16 %v2472, %v2468
    %v2609 = vpack.c.b16 %v2473, %v2469
    %v2610 = vpack.c.b16 %v2474, %v2470
    %v2611 = vpack.c.b16 %v2475, %v2471
    %v2612 = vpack.c.b16 %v2480, %v2476
    %v2613 = vpack.c.b16 %v2481, %v2477
    %v2614 = vpack.c.b16 %v2482, %v2478
    %v2615 = vpack.c.b16 %v2483, %v2479
    %v2616 = vpack.c.b16 %v2488, %v2484
    %v2617 = vpack.c.b16 %v2489, %v2485
    %v2618 = vpack.c.b16 %v2490, %v2486
    %v2619 = vpack.c.b16 %v2491, %v2487
    %v2620 = vpack.c.b16 %v2496, %v2492
    %v2621 = vpack.c.b16 %v2497, %v2493
    %v2622 = vpack.c.b16 %v2498, %v2494
    %v2623 = vpack.c.b16 %v2499, %v2495
    %v2624 = vpack.c.b16 %v2504, %v2500
    %v2625 = vpack.c.b16 %v2505, %v2501
    %v2626 = vpack.c.b16 %v2506, %v2502
    %v2627 = vpack.c.b16 %v2507, %v2503
    %v2628 = vpack.c.b16 %v2512, %v2508
    %v2629 = vpack.c.b16 %v2513, %v2509
    %v2630 = vpack.c.b16 %v2514, %v2510
    %v2631 = vpack.c.b16 %v2515, %v2511
    %v2632 = vpack.c.b16 %v2520, %v2516
    %v2633 = vpack.c.b16 %v2521, %v2517
    %v2634 = vpack.c.b16 %v2522, %v2518
    %v2635 = vpack.c.b16 %v2523, %v2519
    %v2636 = vpack.c.b16 %v2528, %v2524
    %v2637 = vpack.c.b16 %v2529, %v2525
    %v2638 = vpack.c.b16 %v2530, %v2526
    %v2639 = vpack.c.b16 %v2531, %v2527
    %v2640 = vpack.c.b16 %v2536, %v2532
    %v2641 = vpack.c.b16 %v2537, %v2533
    %v2642 = vpack.c.b16 %v2538, %v2534
    %v2643 = vpack.c.b16 %v2539, %v2535
    %v2644 = vpack.c.b16 %v2544, %v2540
    %v2645 = vpack.c.b16 %v2545, %v2541
    %v2646 = vpack.c.b16 %v2546, %v2542
    %v2647 = vpack.c.b16 %v2547, %v2543
    %v2648 = vpack.c.b16 %v2552, %v2548
    %v2649 = vpack.c.b16 %v2553, %v2549
    %v2650 = vpack.c.b16 %v2554, %v2550
    %v2651 = vpack.c.b16 %v2555, %v2551
    %v2652 = vpack.c.b16 %v2560, %v2556
    %v2653 = vpack.c.b16 %v2561, %v2557
    %v2654 = vpack.c.b16 %v2562, %v2558
    %v2655 = vpack.c.b16 %v2563, %v2559
    %v2656 = vpack.c.b16 %v2568, %v2564
    %v2657 = vpack.c.b16 %v2569, %v2565
    %v2658 = vpack.c.b16 %v2570, %v2566
    %v2659 = vpack.c.b16 %v2571, %v2567
    %v2660 = vpack.c.b16 %v2576, %v2572
    %v2661 = vpack.c.b16 %v2577, %v2573
    %v2662 = vpack.c.b16 %v2578, %v2574
    %v2663 = vpack.c.b16 %v2579, %v2575
    %v2664 = vpack.c.b16 %v2584, %v2580
    %v2665 = vpack.c.b16 %v2585, %v2581
    %v2666 = vpack.c.b16 %v2586, %v2582
    %v2667 = vpack.c.b16 %v2587, %v2583
    %v2668 = vpack.c.b16 %v2592, %v2588
    %v2669 = vpack.c.b16 %v2593, %v2589
    %v2670 = vpack.c.b16 %v2594, %v2590
    %v2671 = vpack.c.b16 %v2595, %v2591
    %vm2729 = vcmask 130048
    %v2731 = vsel %vm2729, %v2599, 0
    %v2734 = vsel %vm2729, %v2603, 0
    %v2737 = vsel %vm2729, %v2607, 0
    %v2740 = vsel %vm2729, %v2611, 0
    %v2743 = vsel %vm2729, %v2615, 0
    %v2746 = vsel %vm2729, %v2619, 0
    %v2749 = vsel %vm2729, %v2623, 0
    %v2752 = vsel %vm2729, %v2627, 0
    %v2755 = vsel %vm2729, %v2631, 0
    %v2758 = vsel %vm2729, %v2635, 0
    %v2761 = vsel %vm2729, %v2639, 0
    %v2764 = vsel %vm2729, %v2643, 0
    %v2767 = vsel %vm2729, %v2647, 0
    %v2770 = vsel %vm2729, %v2651, 0
    %v2773 = vsel %vm2729, %v2655, 0
    %v2776 = vsel %vm2729, %v2659, 0
    %v2779 = vsel %vm2729, %v2663, 0
    %v2782 = vsel %vm2729, %v2667, 0
    %v2785 = vsel %vm2729, %v2671, 0
    %2787 = vmatprep.subr.bf16.mxu0 %v2181
    %2788 = vmatpush1.bf16.msra.mxu0 %v2180
    %2789 = vmatprep.subr.bf16.mxu0 %v2179
    %2790 = vmatpush1.bf16.msra.mxu0 %v2178
    %2791 = vmatprep.subr.bf16.mxu0 %v2177
    %2792 = vmatpush1.bf16.msra.mxu0 %v2176
    %2793 = vmatprep.subr.bf16.mxu0 %v2175
    %2794 = vmatpush1.bf16.msra.mxu0 %v2174
    %2795 = vmatprep.subr.bf16.mxu0 %v2173
    %2796 = vmatpush1.bf16.msra.mxu0 %v2172
    %2797 = vmatprep.subr.bf16.mxu0 %v2171
    %2798 = vmatpush1.bf16.msra.mxu0 %v2170
    %2799 = vmatprep.subr.bf16.mxu0 %v2169
    %2800 = vmatpush1.bf16.msra.mxu0 %v2168
    %2801 = vmatprep.subr.bf16.mxu0 %v2167
    %2802 = vmatpush1.bf16.msra.mxu0 %v2166
    %2803 = vmatprep.subr.bf16.mxu0 %v2197
    %2804 = vmatpush2.bf16.msra.mxu0 %v2196
    %2805 = vmatprep.subr.bf16.mxu0 %v2195
    %2806 = vmatpush2.bf16.msra.mxu0 %v2194
    %2807 = vmatprep.subr.bf16.mxu0 %v2193
    %2808 = vmatpush2.bf16.msra.mxu0 %v2192
    %2809 = vmatprep.subr.bf16.mxu0 %v2191
    %2810 = vmatpush2.bf16.msra.mxu0 %v2190
    %2811 = vmatprep.subr.bf16.mxu0 %v2189
    %2812 = vmatpush2.bf16.msra.mxu0 %v2188
    %2813 = vmatprep.subr.bf16.mxu0 %v2187
    %2814 = vmatpush2.bf16.msra.mxu0 %v2186
    %2815 = vmatprep.subr.bf16.mxu0 %v2185
    %2816 = vmatpush2.bf16.msra.mxu0 %v2184
    %2817 = vmatprep.subr.bf16.mxu0 %v2183
    %2818 = vmatpush2.bf16.msra.mxu0 %v2182
    %2819 = vmatprep.mubr.bf16.mxu0 %v2597
    %2820 = vmatmul.mubr.bf16.gmra.mxu0 %v2596
    %v2821 = vpop.f32.mrf.mxu0
    %v2822 = vadd.f32 %v2218, %v2821
    %v2823 = vpop.f32.mrf.mxu0
    %v2824 = vadd.f32 %v2218, %v2823
    %v2825 = vpop.f32.mrf.mxu0
    %v2826 = vadd.f32 %v2222, %v2825
    %v2827 = vpop.f32.mrf.mxu0
    %v2828 = vadd.f32 %v2222, %v2827
    %2829 = vmatprep.mubr.bf16.mxu0 %v2601
    %2830 = vmatmul.mubr.bf16.gmra.mxu0 %v2600
    %v2831 = vpop.f32.mrf.mxu0
    %v2832 = vadd.f32 %v2226, %v2831
    %v2833 = vpop.f32.mrf.mxu0
    %v2834 = vadd.f32 %v2226, %v2833
    %v2835 = vpop.f32.mrf.mxu0
    %v2836 = vadd.f32 %v2230, %v2835
    %v2837 = vpop.f32.mrf.mxu0
    %v2838 = vadd.f32 %v2230, %v2837
    %2839 = vmatprep.mubr.bf16.mxu0 %v2605
    %2840 = vmatmul.mubr.bf16.gmra.mxu0 %v2604
    %v2841 = vpop.f32.mrf.mxu0
    %v2842 = vadd.f32 %v2234, %v2841
    %v2843 = vpop.f32.mrf.mxu0
    %v2844 = vadd.f32 %v2234, %v2843
    %v2845 = vpop.f32.mrf.mxu0
    %v2846 = vadd.f32 %v2238, %v2845
    %v2847 = vpop.f32.mrf.mxu0
    %v2848 = vadd.f32 %v2238, %v2847
    %2849 = vmatprep.mubr.bf16.mxu0 %v2609
    %2850 = vmatmul.mubr.bf16.gmra.mxu0 %v2608
    %v2851 = vpop.f32.mrf.mxu0
    %v2852 = vadd.f32 %v2242, %v2851
    %v2853 = vpop.f32.mrf.mxu0
    %v2854 = vadd.f32 %v2242, %v2853
    %v2855 = vpop.f32.mrf.mxu0
    %v2856 = vadd.f32 %v2246, %v2855
    %v2857 = vpop.f32.mrf.mxu0
    %v2858 = vadd.f32 %v2246, %v2857
    %2859 = vmatprep.mubr.bf16.mxu0 %v2613
    %2860 = vmatmul.mubr.bf16.gmra.mxu0 %v2612
    %v2861 = vpop.f32.mrf.mxu0
    %v2862 = vadd.f32 %v2250, %v2861
    %v2863 = vpop.f32.mrf.mxu0
    %v2864 = vadd.f32 %v2250, %v2863
    %v2865 = vpop.f32.mrf.mxu0
    %v2866 = vadd.f32 %v2254, %v2865
    %v2867 = vpop.f32.mrf.mxu0
    %v2868 = vadd.f32 %v2254, %v2867
    %2869 = vmatprep.mubr.bf16.mxu0 %v2617
    %2870 = vmatmul.mubr.bf16.gmra.mxu0 %v2616
    %v2871 = vpop.f32.mrf.mxu0
    %v2872 = vadd.f32 %v2258, %v2871
    %v2873 = vpop.f32.mrf.mxu0
    %v2874 = vadd.f32 %v2258, %v2873
    %v2875 = vpop.f32.mrf.mxu0
    %v2876 = vadd.f32 %v2262, %v2875
    %v2877 = vpop.f32.mrf.mxu0
    %v2878 = vadd.f32 %v2262, %v2877
    %2879 = vmatprep.mubr.bf16.mxu0 %v2621
    %2880 = vmatmul.mubr.bf16.gmra.mxu0 %v2620
    %v2881 = vpop.f32.mrf.mxu0
    %v2882 = vadd.f32 %v2266, %v2881
    %v2883 = vpop.f32.mrf.mxu0
    %v2884 = vadd.f32 %v2266, %v2883
    %v2885 = vpop.f32.mrf.mxu0
    %v2886 = vadd.f32 %v2270, %v2885
    %v2887 = vpop.f32.mrf.mxu0
    %v2888 = vadd.f32 %v2270, %v2887
    %2889 = vmatprep.mubr.bf16.mxu0 %v2625
    %2890 = vmatmul.mubr.bf16.gmra.mxu0 %v2624
    %v2891 = vpop.f32.mrf.mxu0
    %v2892 = vadd.f32 %v2274, %v2891
    %v2893 = vpop.f32.mrf.mxu0
    %v2894 = vadd.f32 %v2274, %v2893
    %v2895 = vpop.f32.mrf.mxu0
    %v2896 = vadd.f32 %v2278, %v2895
    %v2897 = vpop.f32.mrf.mxu0
    %v2898 = vadd.f32 %v2278, %v2897
    %2899 = vmatprep.mubr.bf16.mxu0 %v2629
    %2900 = vmatmul.mubr.bf16.gmra.mxu0 %v2628
    %v2901 = vpop.f32.mrf.mxu0
    %v2902 = vadd.f32 %v2282, %v2901
    %v2903 = vpop.f32.mrf.mxu0
    %v2904 = vadd.f32 %v2282, %v2903
    %v2905 = vpop.f32.mrf.mxu0
    %v2906 = vadd.f32 %v2286, %v2905
    %v2907 = vpop.f32.mrf.mxu0
    %v2908 = vadd.f32 %v2286, %v2907
    %2909 = vmatprep.mubr.bf16.mxu0 %v2633
    %2910 = vmatmul.mubr.bf16.gmra.mxu0 %v2632
    %v2911 = vpop.f32.mrf.mxu0
    %v2912 = vadd.f32 %v2290, %v2911
    %v2913 = vpop.f32.mrf.mxu0
    %v2914 = vadd.f32 %v2290, %v2913
    %v2915 = vpop.f32.mrf.mxu0
    %v2916 = vadd.f32 %v2294, %v2915
    %v2917 = vpop.f32.mrf.mxu0
    %v2918 = vadd.f32 %v2294, %v2917
    %2919 = vmatprep.mubr.bf16.mxu0 %v2637
    %2920 = vmatmul.mubr.bf16.gmra.mxu0 %v2636
    %v2921 = vpop.f32.mrf.mxu0
    %v2922 = vadd.f32 %v2298, %v2921
    %v2923 = vpop.f32.mrf.mxu0
    %v2924 = vadd.f32 %v2298, %v2923
    %v2925 = vpop.f32.mrf.mxu0
    %v2926 = vadd.f32 %v2302, %v2925
    %v2927 = vpop.f32.mrf.mxu0
    %v2928 = vadd.f32 %v2302, %v2927
    %2929 = vmatprep.mubr.bf16.mxu0 %v2641
    %2930 = vmatmul.mubr.bf16.gmra.mxu0 %v2640
    %v2931 = vpop.f32.mrf.mxu0
    %v2932 = vadd.f32 %v2306, %v2931
    %v2933 = vpop.f32.mrf.mxu0
    %v2934 = vadd.f32 %v2306, %v2933
    %v2935 = vpop.f32.mrf.mxu0
    %v2936 = vadd.f32 %v2310, %v2935
    %v2937 = vpop.f32.mrf.mxu0
    %v2938 = vadd.f32 %v2310, %v2937
    %2939 = vmatprep.mubr.bf16.mxu0 %v2645
    %2940 = vmatmul.mubr.bf16.gmra.mxu0 %v2644
    %v2941 = vpop.f32.mrf.mxu0
    %v2942 = vadd.f32 %v2314, %v2941
    %v2943 = vpop.f32.mrf.mxu0
    %v2944 = vadd.f32 %v2314, %v2943
    %v2945 = vpop.f32.mrf.mxu0
    %v2946 = vadd.f32 %v2318, %v2945
    %v2947 = vpop.f32.mrf.mxu0
    %v2948 = vadd.f32 %v2318, %v2947
    %2949 = vmatprep.mubr.bf16.mxu0 %v2649
    %2950 = vmatmul.mubr.bf16.gmra.mxu0 %v2648
    %v2951 = vpop.f32.mrf.mxu0
    %v2952 = vadd.f32 %v2322, %v2951
    %v2953 = vpop.f32.mrf.mxu0
    %v2954 = vadd.f32 %v2322, %v2953
    %v2955 = vpop.f32.mrf.mxu0
    %v2956 = vadd.f32 %v2326, %v2955
    %v2957 = vpop.f32.mrf.mxu0
    %v2958 = vadd.f32 %v2326, %v2957
    %2959 = vmatprep.mubr.bf16.mxu0 %v2653
    %2960 = vmatmul.mubr.bf16.gmra.mxu0 %v2652
    %v2961 = vpop.f32.mrf.mxu0
    %v2962 = vadd.f32 %v2330, %v2961
    %v2963 = vpop.f32.mrf.mxu0
    %v2964 = vadd.f32 %v2330, %v2963
    %v2965 = vpop.f32.mrf.mxu0
    %v2966 = vadd.f32 %v2334, %v2965
    %v2967 = vpop.f32.mrf.mxu0
    %v2968 = vadd.f32 %v2334, %v2967
    %2969 = vmatprep.mubr.bf16.mxu0 %v2657
    %2970 = vmatmul.mubr.bf16.gmra.mxu0 %v2656
    %v2971 = vpop.f32.mrf.mxu0
    %v2972 = vadd.f32 %v2338, %v2971
    %v2973 = vpop.f32.mrf.mxu0
    %v2974 = vadd.f32 %v2338, %v2973
    %v2975 = vpop.f32.mrf.mxu0
    %v2976 = vadd.f32 %v2342, %v2975
    %v2977 = vpop.f32.mrf.mxu0
    %v2978 = vadd.f32 %v2342, %v2977
    %2979 = vmatprep.mubr.bf16.mxu0 %v2661
    %2980 = vmatmul.mubr.bf16.gmra.mxu0 %v2660
    %v2981 = vpop.f32.mrf.mxu0
    %v2982 = vadd.f32 %v2346, %v2981
    %v2983 = vpop.f32.mrf.mxu0
    %v2984 = vadd.f32 %v2346, %v2983
    %v2985 = vpop.f32.mrf.mxu0
    %v2986 = vadd.f32 %v2350, %v2985
    %v2987 = vpop.f32.mrf.mxu0
    %v2988 = vadd.f32 %v2350, %v2987
    %2989 = vmatprep.mubr.bf16.mxu0 %v2665
    %2990 = vmatmul.mubr.bf16.gmra.mxu0 %v2664
    %v2991 = vpop.f32.mrf.mxu0
    %v2992 = vadd.f32 %v2354, %v2991
    %v2993 = vpop.f32.mrf.mxu0
    %v2994 = vadd.f32 %v2354, %v2993
    %v2995 = vpop.f32.mrf.mxu0
    %v2996 = vadd.f32 %v2358, %v2995
    %v2997 = vpop.f32.mrf.mxu0
    %v2998 = vadd.f32 %v2358, %v2997
    %2999 = vmatprep.mubr.bf16.mxu0 %v2669
    %3000 = vmatmul.mubr.bf16.gmra.mxu0 %v2668
    %v3001 = vpop.f32.mrf.mxu0
    %v3002 = vadd.f32 %v2362, %v3001
    %v3003 = vpop.f32.mrf.mxu0
    %v3004 = vadd.f32 %v2362, %v3003
    %v3005 = vpop.f32.mrf.mxu0
    %v3006 = vadd.f32 %v2366, %v3005
    %v3007 = vpop.f32.mrf.mxu0
    %v3008 = vadd.f32 %v2366, %v3007
    %3009 = vdwg.mxu0
    %3010 = vmatprep.subr.bf16.mxu0 %v2213
    %3011 = vmatpush1.bf16.msra.mxu0 %v2212
    %3012 = vmatprep.subr.bf16.mxu0 %v2211
    %3013 = vmatpush1.bf16.msra.mxu0 %v2210
    %3014 = vmatprep.subr.bf16.mxu0 %v2209
    %3015 = vmatpush1.bf16.msra.mxu0 %v2208
    %3016 = vmatprep.subr.bf16.mxu0 %v2207
    %3017 = vmatpush1.bf16.msra.mxu0 %v2206
    %3018 = vmatprep.subr.bf16.mxu0 %v2205
    %3019 = vmatpush1.bf16.msra.mxu0 %v2204
    %3020 = vmatprep.subr.bf16.mxu0 %v2203
    %3021 = vmatpush1.bf16.msra.mxu0 %v2202
    %3022 = vmatprep.subr.bf16.mxu0 %v2201
    %3023 = vmatpush1.bf16.msra.mxu0 %v2200
    %3024 = vmatprep.subr.bf16.mxu0 %v2199
    %3025 = vmatpush1.bf16.msra.mxu0 %v2198
    %3026 = vmatprep.subr.bf16.mxu0 0
    %3027 = vmatpush2.bf16.msra.mxu0 0
    %3028 = vmatprep.subr.bf16.mxu0 0
    %3029 = vmatpush2.bf16.msra.mxu0 0
    %3030 = vmatprep.subr.bf16.mxu0 0
    %3031 = vmatpush2.bf16.msra.mxu0 0
    %3032 = vmatprep.subr.bf16.mxu0 0
    %3033 = vmatpush2.bf16.msra.mxu0 0
    %3034 = vmatprep.subr.bf16.mxu0 0
    %3035 = vmatpush2.bf16.msra.mxu0 0
    %3036 = vmatprep.subr.bf16.mxu0 0
    %3037 = vmatpush2.bf16.msra.mxu0 0
    %3038 = vmatprep.subr.bf16.mxu0 0
    %3039 = vmatpush2.bf16.msra.mxu0 0
    %3040 = vmatprep.subr.bf16.mxu0 %v2215
    %3041 = vmatpush2.bf16.msra.mxu0 %v2214
    %3042 = vmatprep.mubr.bf16.mxu0 %v2731
    %3043 = vmatmul.mubr.bf16.gmra.mxu0 %v2598
    %v3044 = vpop.f32.mrf.mxu0
    %v3045 = vadd.f32 %v2822, %v3044
    %v3046 = vpop.f32.mrf.mxu0
    %v3047 = vadd.f32 %v2824, %v3046
    %v3048 = vpop.f32.mrf.mxu0
    %v3049 = vadd.f32 %v2826, %v3048
    %v3050 = vpop.f32.mrf.mxu0
    %v3051 = vadd.f32 %v2828, %v3050
    %3052 = vmatprep.mubr.bf16.mxu0 %v2734
    %3053 = vmatmul.mubr.bf16.gmra.mxu0 %v2602
    %v3054 = vpop.f32.mrf.mxu0
    %v3055 = vadd.f32 %v2832, %v3054
    %v3056 = vpop.f32.mrf.mxu0
    %v3057 = vadd.f32 %v2834, %v3056
    %v3058 = vpop.f32.mrf.mxu0
    %v3059 = vadd.f32 %v2836, %v3058
    %v3060 = vpop.f32.mrf.mxu0
    %v3061 = vadd.f32 %v2838, %v3060
    %3062 = vmatprep.mubr.bf16.mxu0 %v2737
    %3063 = vmatmul.mubr.bf16.gmra.mxu0 %v2606
    %v3064 = vpop.f32.mrf.mxu0
    %v3065 = vadd.f32 %v2842, %v3064
    %v3066 = vpop.f32.mrf.mxu0
    %v3067 = vadd.f32 %v2844, %v3066
    %v3068 = vpop.f32.mrf.mxu0
    %v3069 = vadd.f32 %v2846, %v3068
    %v3070 = vpop.f32.mrf.mxu0
    %v3071 = vadd.f32 %v2848, %v3070
    %3072 = vmatprep.mubr.bf16.mxu0 %v2740
    %3073 = vmatmul.mubr.bf16.gmra.mxu0 %v2610
    %v3074 = vpop.f32.mrf.mxu0
    %v3075 = vadd.f32 %v2852, %v3074
    %v3076 = vpop.f32.mrf.mxu0
    %v3077 = vadd.f32 %v2854, %v3076
    %v3078 = vpop.f32.mrf.mxu0
    %v3079 = vadd.f32 %v2856, %v3078
    %v3080 = vpop.f32.mrf.mxu0
    %v3081 = vadd.f32 %v2858, %v3080
    %3082 = vmatprep.mubr.bf16.mxu0 %v2743
    %3083 = vmatmul.mubr.bf16.gmra.mxu0 %v2614
    %v3084 = vpop.f32.mrf.mxu0
    %v3085 = vadd.f32 %v2862, %v3084
    %v3086 = vpop.f32.mrf.mxu0
    %v3087 = vadd.f32 %v2864, %v3086
    %v3088 = vpop.f32.mrf.mxu0
    %v3089 = vadd.f32 %v2866, %v3088
    %v3090 = vpop.f32.mrf.mxu0
    %v3091 = vadd.f32 %v2868, %v3090
    %3092 = vmatprep.mubr.bf16.mxu0 %v2746
    %3093 = vmatmul.mubr.bf16.gmra.mxu0 %v2618
    %v3094 = vpop.f32.mrf.mxu0
    %v3095 = vadd.f32 %v2872, %v3094
    %v3096 = vpop.f32.mrf.mxu0
    %v3097 = vadd.f32 %v2874, %v3096
    %v3098 = vpop.f32.mrf.mxu0
    %v3099 = vadd.f32 %v2876, %v3098
    %v3100 = vpop.f32.mrf.mxu0
    %v3101 = vadd.f32 %v2878, %v3100
    %3102 = vmatprep.mubr.bf16.mxu0 %v2749
    %3103 = vmatmul.mubr.bf16.gmra.mxu0 %v2622
    %v3104 = vpop.f32.mrf.mxu0
    %v3105 = vadd.f32 %v2882, %v3104
    %v3106 = vpop.f32.mrf.mxu0
    %v3107 = vadd.f32 %v2884, %v3106
    %v3108 = vpop.f32.mrf.mxu0
    %v3109 = vadd.f32 %v2886, %v3108
    %v3110 = vpop.f32.mrf.mxu0
    %v3111 = vadd.f32 %v2888, %v3110
    %3112 = vmatprep.mubr.bf16.mxu0 %v2752
    %3113 = vmatmul.mubr.bf16.gmra.mxu0 %v2626
    %v3114 = vpop.f32.mrf.mxu0
    %v3115 = vadd.f32 %v2892, %v3114
    %v3116 = vpop.f32.mrf.mxu0
    %v3117 = vadd.f32 %v2894, %v3116
    %v3118 = vpop.f32.mrf.mxu0
    %v3119 = vadd.f32 %v2896, %v3118
    %v3120 = vpop.f32.mrf.mxu0
    %v3121 = vadd.f32 %v2898, %v3120
    %3122 = vmatprep.mubr.bf16.mxu0 %v2755
    %3123 = vmatmul.mubr.bf16.gmra.mxu0 %v2630
    %v3124 = vpop.f32.mrf.mxu0
    %v3125 = vadd.f32 %v2902, %v3124
    %v3126 = vpop.f32.mrf.mxu0
    %v3127 = vadd.f32 %v2904, %v3126
    %v3128 = vpop.f32.mrf.mxu0
    %v3129 = vadd.f32 %v2906, %v3128
    %v3130 = vpop.f32.mrf.mxu0
    %v3131 = vadd.f32 %v2908, %v3130
    %3132 = vmatprep.mubr.bf16.mxu0 %v2758
    %3133 = vmatmul.mubr.bf16.gmra.mxu0 %v2634
    %v3134 = vpop.f32.mrf.mxu0
    %v3135 = vadd.f32 %v2912, %v3134
    %v3136 = vpop.f32.mrf.mxu0
    %v3137 = vadd.f32 %v2914, %v3136
    %v3138 = vpop.f32.mrf.mxu0
    %v3139 = vadd.f32 %v2916, %v3138
    %v3140 = vpop.f32.mrf.mxu0
    %v3141 = vadd.f32 %v2918, %v3140
    %3142 = vmatprep.mubr.bf16.mxu0 %v2761
    %3143 = vmatmul.mubr.bf16.gmra.mxu0 %v2638
    %v3144 = vpop.f32.mrf.mxu0
    %v3145 = vadd.f32 %v2922, %v3144
    %v3146 = vpop.f32.mrf.mxu0
    %v3147 = vadd.f32 %v2924, %v3146
    %v3148 = vpop.f32.mrf.mxu0
    %v3149 = vadd.f32 %v2926, %v3148
    %v3150 = vpop.f32.mrf.mxu0
    %v3151 = vadd.f32 %v2928, %v3150
    %3152 = vmatprep.mubr.bf16.mxu0 %v2764
    %3153 = vmatmul.mubr.bf16.gmra.mxu0 %v2642
    %v3154 = vpop.f32.mrf.mxu0
    %v3155 = vadd.f32 %v2932, %v3154
    %v3156 = vpop.f32.mrf.mxu0
    %v3157 = vadd.f32 %v2934, %v3156
    %v3158 = vpop.f32.mrf.mxu0
    %v3159 = vadd.f32 %v2936, %v3158
    %v3160 = vpop.f32.mrf.mxu0
    %v3161 = vadd.f32 %v2938, %v3160
    %3162 = vmatprep.mubr.bf16.mxu0 %v2767
    %3163 = vmatmul.mubr.bf16.gmra.mxu0 %v2646
    %v3164 = vpop.f32.mrf.mxu0
    %v3165 = vadd.f32 %v2942, %v3164
    %v3166 = vpop.f32.mrf.mxu0
    %v3167 = vadd.f32 %v2944, %v3166
    %v3168 = vpop.f32.mrf.mxu0
    %v3169 = vadd.f32 %v2946, %v3168
    %v3170 = vpop.f32.mrf.mxu0
    %v3171 = vadd.f32 %v2948, %v3170
    %3172 = vmatprep.mubr.bf16.mxu0 %v2770
    %3173 = vmatmul.mubr.bf16.gmra.mxu0 %v2650
    %v3174 = vpop.f32.mrf.mxu0
    %v3175 = vadd.f32 %v2952, %v3174
    %v3176 = vpop.f32.mrf.mxu0
    %v3177 = vadd.f32 %v2954, %v3176
    %v3178 = vpop.f32.mrf.mxu0
    %v3179 = vadd.f32 %v2956, %v3178
    %v3180 = vpop.f32.mrf.mxu0
    %v3181 = vadd.f32 %v2958, %v3180
    %3182 = vmatprep.mubr.bf16.mxu0 %v2773
    %3183 = vmatmul.mubr.bf16.gmra.mxu0 %v2654
    %v3184 = vpop.f32.mrf.mxu0
    %v3185 = vadd.f32 %v2962, %v3184
    %v3186 = vpop.f32.mrf.mxu0
    %v3187 = vadd.f32 %v2964, %v3186
    %v3188 = vpop.f32.mrf.mxu0
    %v3189 = vadd.f32 %v2966, %v3188
    %v3190 = vpop.f32.mrf.mxu0
    %v3191 = vadd.f32 %v2968, %v3190
    %3192 = vmatprep.mubr.bf16.mxu0 %v2776
    %3193 = vmatmul.mubr.bf16.gmra.mxu0 %v2658
    %v3194 = vpop.f32.mrf.mxu0
    %v3195 = vadd.f32 %v2972, %v3194
    %v3196 = vpop.f32.mrf.mxu0
    %v3197 = vadd.f32 %v2974, %v3196
    %v3198 = vpop.f32.mrf.mxu0
    %v3199 = vadd.f32 %v2976, %v3198
    %v3200 = vpop.f32.mrf.mxu0
    %v3201 = vadd.f32 %v2978, %v3200
    %3202 = vmatprep.mubr.bf16.mxu0 %v2779
    %3203 = vmatmul.mubr.bf16.gmra.mxu0 %v2662
    %v3204 = vpop.f32.mrf.mxu0
    %v3205 = vadd.f32 %v2982, %v3204
    %v3206 = vpop.f32.mrf.mxu0
    %v3207 = vadd.f32 %v2984, %v3206
    %v3208 = vpop.f32.mrf.mxu0
    %v3209 = vadd.f32 %v2986, %v3208
    %v3210 = vpop.f32.mrf.mxu0
    %v3211 = vadd.f32 %v2988, %v3210
    %3212 = vmatprep.mubr.bf16.mxu0 %v2782
    %3213 = vmatmul.mubr.bf16.gmra.mxu0 %v2666
    %v3214 = vpop.f32.mrf.mxu0
    %v3215 = vadd.f32 %v2992, %v3214
    %v3216 = vpop.f32.mrf.mxu0
    %v3217 = vadd.f32 %v2994, %v3216
    %v3218 = vpop.f32.mrf.mxu0
    %v3219 = vadd.f32 %v2996, %v3218
    %v3220 = vpop.f32.mrf.mxu0
    %v3221 = vadd.f32 %v2998, %v3220
    %3222 = vmatprep.mubr.bf16.mxu0 %v2785
    %3223 = vmatmul.mubr.bf16.gmra.mxu0 %v2670
    %v3224 = vpop.f32.mrf.mxu0
    %v3225 = vadd.f32 %v3002, %v3224
    %v3226 = vpop.f32.mrf.mxu0
    %v3227 = vadd.f32 %v3004, %v3226
    %v3228 = vpop.f32.mrf.mxu0
    %v3229 = vadd.f32 %v3006, %v3228
    %v3230 = vpop.f32.mrf.mxu0
    %v3231 = vadd.f32 %v3008, %v3230
    %3232 = vdwg.mxu0
    %v3233 = vmax.f32 %v3045, 0.0
    %v3234 = vmax.f32 %v3047, 0.0
    %v3235 = vmax.f32 %v3049, 0.0
    %v3236 = vmax.f32 %v3051, 0.0
    %v3237 = vmax.f32 %v3055, 0.0
    %v3238 = vmax.f32 %v3057, 0.0
    %v3239 = vmax.f32 %v3059, 0.0
    %v3240 = vmax.f32 %v3061, 0.0
    %v3241 = vmax.f32 %v3065, 0.0
    %v3242 = vmax.f32 %v3067, 0.0
    %v3243 = vmax.f32 %v3069, 0.0
    %v3244 = vmax.f32 %v3071, 0.0
    %v3245 = vmax.f32 %v3075, 0.0
    %v3246 = vmax.f32 %v3077, 0.0
    %v3247 = vmax.f32 %v3079, 0.0
    %v3248 = vmax.f32 %v3081, 0.0
    %v3249 = vmax.f32 %v3085, 0.0
    %v3250 = vmax.f32 %v3087, 0.0
    %v3251 = vmax.f32 %v3089, 0.0
    %v3252 = vmax.f32 %v3091, 0.0
    %v3253 = vmax.f32 %v3095, 0.0
    %v3254 = vmax.f32 %v3097, 0.0
    %v3255 = vmax.f32 %v3099, 0.0
    %v3256 = vmax.f32 %v3101, 0.0
    %v3257 = vmax.f32 %v3105, 0.0
    %v3258 = vmax.f32 %v3107, 0.0
    %v3259 = vmax.f32 %v3109, 0.0
    %v3260 = vmax.f32 %v3111, 0.0
    %v3261 = vmax.f32 %v3115, 0.0
    %v3262 = vmax.f32 %v3117, 0.0
    %v3263 = vmax.f32 %v3119, 0.0
    %v3264 = vmax.f32 %v3121, 0.0
    %v3265 = vmax.f32 %v3125, 0.0
    %v3266 = vmax.f32 %v3127, 0.0
    %v3267 = vmax.f32 %v3129, 0.0
    %v3268 = vmax.f32 %v3131, 0.0
    %v3269 = vmax.f32 %v3135, 0.0
    %v3270 = vmax.f32 %v3137, 0.0
    %v3271 = vmax.f32 %v3139, 0.0
    %v3272 = vmax.f32 %v3141, 0.0
    %v3273 = vmax.f32 %v3145, 0.0
    %v3274 = vmax.f32 %v3147, 0.0
    %v3275 = vmax.f32 %v3149, 0.0
    %v3276 = vmax.f32 %v3151, 0.0
    %v3277 = vmax.f32 %v3155, 0.0
    %v3278 = vmax.f32 %v3157, 0.0
    %v3279 = vmax.f32 %v3159, 0.0
    %v3280 = vmax.f32 %v3161, 0.0
    %v3281 = vmax.f32 %v3165, 0.0
    %v3282 = vmax.f32 %v3167, 0.0
    %v3283 = vmax.f32 %v3169, 0.0
    %v3284 = vmax.f32 %v3171, 0.0
    %v3285 = vmax.f32 %v3175, 0.0
    %v3286 = vmax.f32 %v3177, 0.0
    %v3287 = vmax.f32 %v3179, 0.0
    %v3288 = vmax.f32 %v3181, 0.0
    %v3289 = vmax.f32 %v3185, 0.0
    %v3290 = vmax.f32 %v3187, 0.0
    %v3291 = vmax.f32 %v3189, 0.0
    %v3292 = vmax.f32 %v3191, 0.0
    %v3293 = vmax.f32 %v3195, 0.0
    %v3294 = vmax.f32 %v3197, 0.0
    %v3295 = vmax.f32 %v3199, 0.0
    %v3296 = vmax.f32 %v3201, 0.0
    %v3297 = vmax.f32 %v3205, 0.0
    %v3298 = vmax.f32 %v3207, 0.0
    %v3299 = vmax.f32 %v3209, 0.0
    %v3300 = vmax.f32 %v3211, 0.0
    %v3301 = vmax.f32 %v3215, 0.0
    %v3302 = vmax.f32 %v3217, 0.0
    %v3303 = vmax.f32 %v3219, 0.0
    %v3304 = vmax.f32 %v3221, 0.0
    %v3305 = vmax.f32 %v3225, 0.0
    %v3306 = vmax.f32 %v3227, 0.0
    %v3307 = vmax.f32 %v3229, 0.0
    %v3308 = vmax.f32 %v3231, 0.0
    %3309 = vset.pattern.permute.xlu0 6
    %3310 = vperm.xlu0 %3309, %v17
    %v3311 = vpop.permute.xlu0 %3310
    %3313 = vset.pattern.permute.xlu0 6
    %3314 = vperm.xlu0 %3313, %v18
    %v3315 = vpop.permute.xlu0 %3314
    %3317 = vset.pattern.permute.xlu0 6
    %3318 = vperm.xlu0 %3317, %v19
    %v3319 = vpop.permute.xlu0 %3318
    %3321 = vset.pattern.permute.xlu0 6
    %3322 = vperm.xlu0 %3321, %v20
    %v3323 = vpop.permute.xlu0 %3322
    %3325 = vset.pattern.permute.xlu0 6
    %3326 = vperm.xlu0 %3325, %v21
    %v3327 = vpop.permute.xlu0 %3326
    %3329 = vset.pattern.permute.xlu0 6
    %3330 = vperm.xlu0 %3329, %v22
    %v3331 = vpop.permute.xlu0 %3330
    %3333 = vset.pattern.permute.xlu0 6
    %3334 = vperm.xlu0 %3333, %v23
    %v3335 = vpop.permute.xlu0 %3334
    %3337 = vset.pattern.permute.xlu0 6
    %3338 = vperm.xlu0 %3337, %v24
    %v3339 = vpop.permute.xlu0 %3338
    %3341 = vset.pattern.permute.xlu0 6
    %3342 = vperm.xlu0 %3341, %v25
    %v3343 = vpop.permute.xlu0 %3342
    %3345 = vset.pattern.permute.xlu0 6
    %3346 = vperm.xlu0 %3345, %v26
    %v3347 = vpop.permute.xlu0 %3346
    %3349 = vset.pattern.permute.xlu0 6
    %3350 = vperm.xlu0 %3349, %v27
    %v3351 = vpop.permute.xlu0 %3350
    %3353 = vset.pattern.permute.xlu0 6
    %3354 = vperm.xlu0 %3353, %v28
    %v3355 = vpop.permute.xlu0 %3354
    %3357 = vset.pattern.permute.xlu0 6
    %3358 = vperm.xlu0 %3357, %v29
    %v3359 = vpop.permute.xlu0 %3358
    %3361 = vset.pattern.permute.xlu0 6
    %3362 = vperm.xlu0 %3361, %v30
    %v3363 = vpop.permute.xlu0 %3362
    %3365 = vset.pattern.permute.xlu0 6
    %3366 = vperm.xlu0 %3365, %v31
    %v3367 = vpop.permute.xlu0 %3366
    %3369 = vset.pattern.permute.xlu0 6
    %3370 = vperm.xlu0 %3369, %v32
    %v3371 = vpop.permute.xlu0 %3370
    %3373 = vset.pattern.permute.xlu0 6
    %3374 = vperm.xlu0 %3373, %v33
    %v3375 = vpop.permute.xlu0 %3374
    %3377 = vset.pattern.permute.xlu0 6
    %3378 = vperm.xlu0 %3377, %v34
    %v3379 = vpop.permute.xlu0 %3378
    %3381 = vset.pattern.permute.xlu0 6
    %3382 = vperm.xlu0 %3381, %v35
    %v3383 = vpop.permute.xlu0 %3382
    %3385 = vset.pattern.permute.xlu0 6
    %3386 = vperm.xlu0 %3385, %v36
    %v3387 = vpop.permute.xlu0 %3386
    %3389 = vset.pattern.permute.xlu0 6
    %3390 = vperm.xlu0 %3389, %v37
    %v3391 = vpop.permute.xlu0 %3390
    %3393 = vset.pattern.permute.xlu0 6
    %3394 = vperm.xlu0 %3393, %v38
    %v3395 = vpop.permute.xlu0 %3394
    %3397 = vset.pattern.permute.xlu0 6
    %3398 = vperm.xlu0 %3397, %v39
    %v3399 = vpop.permute.xlu0 %3398
    %3401 = vset.pattern.permute.xlu0 6
    %3402 = vperm.xlu0 %3401, %v40
    %v3403 = vpop.permute.xlu0 %3402
    %3405 = vset.pattern.permute.xlu0 6
    %3406 = vperm.xlu0 %3405, %v41
    %v3407 = vpop.permute.xlu0 %3406
    %3409 = vset.pattern.permute.xlu0 6
    %3410 = vperm.xlu0 %3409, %v42
    %v3411 = vpop.permute.xlu0 %3410
    %3413 = vset.pattern.permute.xlu0 6
    %3414 = vperm.xlu0 %3413, %v43
    %v3415 = vpop.permute.xlu0 %3414
    %3417 = vset.pattern.permute.xlu0 6
    %3418 = vperm.xlu0 %3417, %v44
    %v3419 = vpop.permute.xlu0 %3418
    %3421 = vset.pattern.permute.xlu0 6
    %3422 = vperm.xlu0 %3421, %v45
    %v3423 = vpop.permute.xlu0 %3422
    %3425 = vset.pattern.permute.xlu0 6
    %3426 = vperm.xlu0 %3425, %v46
    %v3427 = vpop.permute.xlu0 %3426
    %3429 = vset.pattern.permute.xlu0 6
    %3430 = vperm.xlu0 %3429, %v47
    %v3431 = vpop.permute.xlu0 %3430
    %3433 = vset.pattern.permute.xlu0 6
    %3434 = vperm.xlu0 %3433, %v48
    %v3435 = vpop.permute.xlu0 %3434
    %3437 = vset.pattern.permute.xlu0 6
    %3438 = vperm.xlu0 %3437, %v49
    %v3439 = vpop.permute.xlu0 %3438
    %3441 = vset.pattern.permute.xlu0 6
    %3442 = vperm.xlu0 %3441, %v50
    %v3443 = vpop.permute.xlu0 %3442
    %3445 = vset.pattern.permute.xlu0 6
    %3446 = vperm.xlu0 %3445, %v51
    %v3447 = vpop.permute.xlu0 %3446
    %3449 = vset.pattern.permute.xlu0 6
    %3450 = vperm.xlu0 %3449, %v52
    %v3451 = vpop.permute.xlu0 %3450
    %3453 = vset.pattern.permute.xlu0 6
    %3454 = vperm.xlu0 %3453, %v53
    %v3455 = vpop.permute.xlu0 %3454
    %3457 = vset.pattern.permute.xlu0 6
    %3458 = vperm.xlu0 %3457, %v54
    %v3459 = vpop.permute.xlu0 %3458
    %v3461 = vmul.f32 %v3311, %v3233
    %v3462 = vmul.f32 %v3311, %v3234
    %v3463 = vmul.f32 %v3315, %v3235
    %v3464 = vmul.f32 %v3315, %v3236
    %v3465 = vmul.f32 %v3319, %v3237
    %v3466 = vmul.f32 %v3319, %v3238
    %v3467 = vmul.f32 %v3323, %v3239
    %v3468 = vmul.f32 %v3323, %v3240
    %v3469 = vmul.f32 %v3327, %v3241
    %v3470 = vmul.f32 %v3327, %v3242
    %v3471 = vmul.f32 %v3331, %v3243
    %v3472 = vmul.f32 %v3331, %v3244
    %v3473 = vmul.f32 %v3335, %v3245
    %v3474 = vmul.f32 %v3335, %v3246
    %v3475 = vmul.f32 %v3339, %v3247
    %v3476 = vmul.f32 %v3339, %v3248
    %v3477 = vmul.f32 %v3343, %v3249
    %v3478 = vmul.f32 %v3343, %v3250
    %v3479 = vmul.f32 %v3347, %v3251
    %v3480 = vmul.f32 %v3347, %v3252
    %v3481 = vmul.f32 %v3351, %v3253
    %v3482 = vmul.f32 %v3351, %v3254
    %v3483 = vmul.f32 %v3355, %v3255
    %v3484 = vmul.f32 %v3355, %v3256
    %v3485 = vmul.f32 %v3359, %v3257
    %v3486 = vmul.f32 %v3359, %v3258
    %v3487 = vmul.f32 %v3363, %v3259
    %v3488 = vmul.f32 %v3363, %v3260
    %v3489 = vmul.f32 %v3367, %v3261
    %v3490 = vmul.f32 %v3367, %v3262
    %v3491 = vmul.f32 %v3371, %v3263
    %v3492 = vmul.f32 %v3371, %v3264
    %v3493 = vmul.f32 %v3375, %v3265
    %v3494 = vmul.f32 %v3375, %v3266
    %v3495 = vmul.f32 %v3379, %v3267
    %v3496 = vmul.f32 %v3379, %v3268
    %v3497 = vmul.f32 %v3383, %v3269
    %v3498 = vmul.f32 %v3383, %v3270
    %v3499 = vmul.f32 %v3387, %v3271
    %v3500 = vmul.f32 %v3387, %v3272
    %v3501 = vmul.f32 %v3391, %v3273
    %v3502 = vmul.f32 %v3391, %v3274
    %v3503 = vmul.f32 %v3395, %v3275
    %v3504 = vmul.f32 %v3395, %v3276
    %v3505 = vmul.f32 %v3399, %v3277
    %v3506 = vmul.f32 %v3399, %v3278
    %v3507 = vmul.f32 %v3403, %v3279
    %v3508 = vmul.f32 %v3403, %v3280
    %v3509 = vmul.f32 %v3407, %v3281
    %v3510 = vmul.f32 %v3407, %v3282
    %v3511 = vmul.f32 %v3411, %v3283
    %v3512 = vmul.f32 %v3411, %v3284
    %v3513 = vmul.f32 %v3415, %v3285
    %v3514 = vmul.f32 %v3415, %v3286
    %v3515 = vmul.f32 %v3419, %v3287
    %v3516 = vmul.f32 %v3419, %v3288
    %v3517 = vmul.f32 %v3423, %v3289
    %v3518 = vmul.f32 %v3423, %v3290
    %v3519 = vmul.f32 %v3427, %v3291
    %v3520 = vmul.f32 %v3427, %v3292
    %v3521 = vmul.f32 %v3431, %v3293
    %v3522 = vmul.f32 %v3431, %v3294
    %v3523 = vmul.f32 %v3435, %v3295
    %v3524 = vmul.f32 %v3435, %v3296
    %v3525 = vmul.f32 %v3439, %v3297
    %v3526 = vmul.f32 %v3439, %v3298
    %v3527 = vmul.f32 %v3443, %v3299
    %v3528 = vmul.f32 %v3443, %v3300
    %v3529 = vmul.f32 %v3447, %v3301
    %v3530 = vmul.f32 %v3447, %v3302
    %v3531 = vmul.f32 %v3451, %v3303
    %v3532 = vmul.f32 %v3451, %v3304
    %v3533 = vmul.f32 %v3455, %v3305
    %v3534 = vmul.f32 %v3455, %v3306
    %v3535 = vmul.f32 %v3459, %v3307
    %v3536 = vmul.f32 %v3459, %v3308
    %v3537 = vadd.f32 %v3461, %v3463
    %v3538 = vadd.f32 %v3537, %v3465
    %v3539 = vadd.f32 %v3538, %v3467
    %v3540 = vadd.f32 %v3539, %v3469
    %v3541 = vadd.f32 %v3540, %v3471
    %v3542 = vadd.f32 %v3541, %v3473
    %v3543 = vadd.f32 %v3542, %v3475
    %v3544 = vadd.f32 %v3543, %v3477
    %v3545 = vadd.f32 %v3544, %v3479
    %v3546 = vadd.f32 %v3545, %v3481
    %v3547 = vadd.f32 %v3546, %v3483
    %v3548 = vadd.f32 %v3547, %v3485
    %v3549 = vadd.f32 %v3548, %v3487
    %v3550 = vadd.f32 %v3549, %v3489
    %v3551 = vadd.f32 %v3550, %v3491
    %v3552 = vadd.f32 %v3551, %v3493
    %v3553 = vadd.f32 %v3552, %v3495
    %v3554 = vadd.f32 %v3553, %v3497
    %v3555 = vadd.f32 %v3554, %v3499
    %v3556 = vadd.f32 %v3555, %v3501
    %v3557 = vadd.f32 %v3556, %v3503
    %v3558 = vadd.f32 %v3557, %v3505
    %v3559 = vadd.f32 %v3558, %v3507
    %v3560 = vadd.f32 %v3559, %v3509
    %v3561 = vadd.f32 %v3560, %v3511
    %v3562 = vadd.f32 %v3561, %v3513
    %v3563 = vadd.f32 %v3562, %v3515
    %v3564 = vadd.f32 %v3563, %v3517
    %v3565 = vadd.f32 %v3564, %v3519
    %v3566 = vadd.f32 %v3565, %v3521
    %v3567 = vadd.f32 %v3566, %v3523
    %v3568 = vadd.f32 %v3567, %v3525
    %v3569 = vadd.f32 %v3568, %v3527
    %v3570 = vadd.f32 %v3569, %v3529
    %v3571 = vadd.f32 %v3570, %v3531
    %v3572 = vadd.f32 %v3571, %v3533
    %vm3573 = vcmask 1043456
    %v3574 = vsel %vm3573, %v3535, 0.0
    %v3575 = vadd.f32 %v3572, %v3574
    %v3576 = vrot.slane %v3575, 4
    %v3577 = vadd.f32 %v3575, %v3576
    %v3578 = vrot.slane %v3577, 2
    %v3579 = vadd.f32 %v3577, %v3578
    %v3580 = vrot.slane %v3579, 1
    %v3581 = vadd.f32 %v3579, %v3580
    %v3582 = vadd.f32 %v3462, %v3464
    %v3583 = vadd.f32 %v3582, %v3466
    %v3584 = vadd.f32 %v3583, %v3468
    %v3585 = vadd.f32 %v3584, %v3470
    %v3586 = vadd.f32 %v3585, %v3472
    %v3587 = vadd.f32 %v3586, %v3474
    %v3588 = vadd.f32 %v3587, %v3476
    %v3589 = vadd.f32 %v3588, %v3478
    %v3590 = vadd.f32 %v3589, %v3480
    %v3591 = vadd.f32 %v3590, %v3482
    %v3592 = vadd.f32 %v3591, %v3484
    %v3593 = vadd.f32 %v3592, %v3486
    %v3594 = vadd.f32 %v3593, %v3488
    %v3595 = vadd.f32 %v3594, %v3490
    %v3596 = vadd.f32 %v3595, %v3492
    %v3597 = vadd.f32 %v3596, %v3494
    %v3598 = vadd.f32 %v3597, %v3496
    %v3599 = vadd.f32 %v3598, %v3498
    %v3600 = vadd.f32 %v3599, %v3500
    %v3601 = vadd.f32 %v3600, %v3502
    %v3602 = vadd.f32 %v3601, %v3504
    %v3603 = vadd.f32 %v3602, %v3506
    %v3604 = vadd.f32 %v3603, %v3508
    %v3605 = vadd.f32 %v3604, %v3510
    %v3606 = vadd.f32 %v3605, %v3512
    %v3607 = vadd.f32 %v3606, %v3514
    %v3608 = vadd.f32 %v3607, %v3516
    %v3609 = vadd.f32 %v3608, %v3518
    %v3610 = vadd.f32 %v3609, %v3520
    %v3611 = vadd.f32 %v3610, %v3522
    %v3612 = vadd.f32 %v3611, %v3524
    %v3613 = vadd.f32 %v3612, %v3526
    %v3614 = vadd.f32 %v3613, %v3528
    %v3615 = vadd.f32 %v3614, %v3530
    %v3616 = vadd.f32 %v3615, %v3532
    %v3617 = vadd.f32 %v3616, %v3534
    %v3618 = vsel %vm3573, %v3536, 0.0
    %v3619 = vadd.f32 %v3617, %v3618
    %v3620 = vrot.slane %v3619, 4
    %v3621 = vadd.f32 %v3619, %v3620
    %v3622 = vrot.slane %v3621, 2
    %v3623 = vadd.f32 %v3621, %v3622
    %v3624 = vrot.slane %v3623, 1
    %v3625 = vadd.f32 %v3623, %v3624
    %3626 = vset.pattern.permute.xlu0 7
    %3627 = vperm.xlu0 %3626, %v17
    %v3628 = vpop.permute.xlu0 %3627
    %v3630 = vadd.f32 %v3581, %v3628
    %v3631 = vadd.f32 %v3625, %v3628
    %v3632 = vtanh.pop %v3630
    %v3633 = vtanh.pop %v3631
    %v3636 = vcombine.low %v3632, %v3633
    %v3638 = vunpack.c.l.s4 1966171168
    %v3639 = vunpack.c.0.s8 %v3638
    %v3640 = vlaneseq
    %v3641 = vshrl.u32 %v3640, 7
    %v3642 = vsub.s32 %v3639, %v3641
    %v3643 = vrot.slane %v3636, %v3642
    %v3645 = vunpack.c.l.s4 1966171168
    %v3646 = vunpack.c.0.s8 %v3645
    %v3647 = vlaneseq
    %v3648 = vshrl.u32 %v3647, 7
    %v3649 = vsub.s32 %v3646, %v3648
    %v3650 = vrot.slane %v3643, %v3649
    %v3652 = vlaneseq
    %vm3653 = vcmp.ge.s32.totalorder %v3652, 0
    %vm3654 = vcmp.lt.s32.totalorder %v3652, 256
    %vm3655 = vmand %vm3653, %vm3654
    %3656 = vst.msk [vmem:[#allocation2] sm:$0x3] %vm3655, %v3650
    // Predicated region
    $region14: #{tpu_custom_call.1} parent=1 // pred_check
      _
    $region15: #{tpu_custom_call.1} parent=1 // pred_check_branch
      %3658 = sbr.rel (0) target = $region17
    $region16: #{tpu_custom_call.1} parent=1 // pred_region
      %s3660 = ssub.s32 32, 16
      %3661 = vsyncadd [#allocation3], %s3660
      %s3663 = sshll.u32 [#allocation2], 4
      %s3664 = int_to_ptr.vmem [resolvable:$true] %s3663
      %3666 = dma.vmem_to_hbm [thread:$0]  %s3664, 16, %s3, [#allocation3]
    $region17: #{tpu_custom_call.1} parent=1 // pred_fallthru
      _
    // Predicated region
    $region18: #{tpu_custom_call.1} parent=1 // pred_check
      _
    $region19: #{tpu_custom_call.1} parent=1 // pred_check_branch
      %3668 = sbr.rel (0) target = $region21
    $region20: #{tpu_custom_call.1} parent=1 // pred_region
      %3669 = dma.done [#allocation3], 32
    $region21: #{tpu_custom_call.1} parent=1 // pred_fallthru
      _
    %3670 = vsyncpa [#allocation3], 1

</llo_original>
